<compile_context>
chip_gen: v7x
topology: tpu7x:2x2x1
jax: 0.10.0
libtpu: 0.0.40
codegen_flags: <defaults>
</compile_context>

<pallas_src>
import functools

import numpy as np
import jax
import jax.numpy as jnp
from jax.experimental import pallas as pl
from jax.experimental.pallas import tpu as pltpu

DTYPE = jnp.bfloat16          # storage dtype for activations / weights
VMEM_LIMIT = 48 << 20         # <= v7x's 64 MiB per-TensorCore VMEM

# torchvision VGG16 `features` configuration ('M' == MaxPool2d(2, 2)).
VGG16_CFG = [64, 64, "M", 128, 128, "M", 256, 256, 256, "M",
             512, 512, 512, "M", 512, 512, 512, "M"]


# ------------- fused Conv3x3 (SAME) [+ ReLU] [+ MaxPool 2x2] kernel ----------
def _conv3x3_kernel(x_ref, w_ref, b_ref, *refs, H, W, Cin, Cout, relu, pool):
    # x_ref : (1, H, W, Cin)   bf16 activation block (one batch element)
    # w_ref : (9*Cin, Cout)    bf16 im2col weights (HWIO flattened)
    # b_ref : (1, Cout)        f32 bias
    # refs  : o_ref [, p_ref], xp_ref(scratch)
    if pool == "both":
        o_ref, p_ref, xp_ref = refs
    else:
        o_ref, xp_ref = refs
        p_ref = None

    # SAME padding on-chip: zero halo + interior copy into an f32 VMEM scratch
    # (f32 keeps the offset store and the shifted reads on the 32-bit path).
    xp_ref[...] = jnp.zeros_like(xp_ref)
    xp_ref[1:H + 1, 1:W + 1, :] = x_ref[0].astype(jnp.float32)

    # im2col: one big-K MXU matmul (K = 9*Cin) instead of 9 small-K matmuls.
    cols = [xp_ref[ky:ky + H, kx:kx + W, :].reshape(H * W, Cin)
            for ky in range(3) for kx in range(3)]
    patch = jnp.concatenate(cols, axis=1).astype(DTYPE)          # (H*W, 9*Cin)
    acc = jnp.dot(patch, w_ref[...], preferred_element_type=jnp.float32)
    acc = acc + b_ref[0, :][None, :]
    if relu:
        acc = jnp.maximum(acc, 0.0)

    if pool in ("none", "both"):
        o_ref[...] = acc.reshape(1, H, W, Cout).astype(o_ref.dtype)
    if pool != "none":
        Ho, Wo = H // 2, W // 2
        hm = jnp.max(acc.reshape(Ho, 2, W, Cout), axis=1)        # row pairs
        pooled = jnp.max(hm.reshape(Ho, Wo, 2, Cout), axis=2)    # col pairs
        tgt = p_ref if pool == "both" else o_ref
        tgt[...] = pooled.reshape(1, Ho, Wo, Cout).astype(tgt.dtype)


def conv3x3_fused(x, w2d, b, *, relu, pool):
    """pool in {'none', 'only', 'both'}; 'both' returns (relu_out, pooled)."""
    N, H, W, Cin = x.shape
    Cout = w2d.shape[1]
    Ho, Wo = H // 2, W // 2
    kern = functools.partial(_conv3x3_kernel, H=H, W=W, Cin=Cin, Cout=Cout,
                             relu=relu, pool=pool)
    full = pl.BlockSpec((1, H, W, Cout), lambda n: (n, 0, 0, 0))
    half = pl.BlockSpec((1, Ho, Wo, Cout), lambda n: (n, 0, 0, 0))
    if pool == "none":
        out_shape = jax.ShapeDtypeStruct((N, H, W, Cout), DTYPE)
        out_specs = full
    elif pool == "only":
        out_shape = jax.ShapeDtypeStruct((N, Ho, Wo, Cout), DTYPE)
        out_specs = half
    else:  # "both"
        out_shape = (jax.ShapeDtypeStruct((N, H, W, Cout), DTYPE),
                     jax.ShapeDtypeStruct((N, Ho, Wo, Cout), DTYPE))
        out_specs = (full, half)
    return pl.pallas_call(
        kern,
        out_shape=out_shape,
        grid=(N,),
        in_specs=[
            pl.BlockSpec((1, H, W, Cin), lambda n: (n, 0, 0, 0)),
            pl.BlockSpec((9 * Cin, Cout), lambda n: (0, 0)),
            pl.BlockSpec((1, Cout), lambda n: (0, 0)),
        ],
        out_specs=out_specs,
        scratch_shapes=[pltpu.VMEM((H + 2, W + 2, Cin), jnp.float32)],
        compiler_params=pltpu.CompilerParams(
            dimension_semantics=("parallel",),
            vmem_limit_bytes=VMEM_LIMIT),
    )(x, w2d, b)


# ------------- standalone ReLU / MaxPool (only for pre-ReLU selects) ---------
def _relu_kernel(x_ref, o_ref):
    o_ref[...] = jnp.maximum(x_ref[...], 0).astype(o_ref.dtype)


def relu_op(x):
    N, H, W, C = x.shape
    spec = pl.BlockSpec((1, H, W, C), lambda n: (n, 0, 0, 0))
    return pl.pallas_call(
        _relu_kernel, out_shape=jax.ShapeDtypeStruct(x.shape, x.dtype),
        grid=(N,), in_specs=[spec], out_specs=spec,
        compiler_params=pltpu.CompilerParams(dimension_semantics=("parallel",)),
    )(x)


def _maxpool_kernel(x_ref, o_ref):
    _, H, W, C = x_ref.shape
    x = x_ref[0].astype(jnp.float32)
    hm = jnp.max(x.reshape(H // 2, 2, W, C), axis=1)
    pooled = jnp.max(hm.reshape(H // 2, W // 2, 2, C), axis=2)
    o_ref[...] = pooled.reshape(1, H // 2, W // 2, C).astype(o_ref.dtype)


def maxpool_op(x):
    N, H, W, C = x.shape
    return pl.pallas_call(
        _maxpool_kernel,
        out_shape=jax.ShapeDtypeStruct((N, H // 2, W // 2, C), x.dtype),
        grid=(N,),
        in_specs=[pl.BlockSpec((1, H, W, C), lambda n: (n, 0, 0, 0))],
        out_specs=pl.BlockSpec((1, H // 2, W // 2, C), lambda n: (n, 0, 0, 0)),
        compiler_params=pltpu.CompilerParams(dimension_semantics=("parallel",)),
    )(x)


# ------------------------------ vgg_net model --------------------------------
class VggNetPallas:
    """Pallas equivalent of vgg_net(select) with deterministic synthetic weights."""

    def __init__(self, select, key):
        self.select = tuple(int(s) for s in select)
        self.select_set = set(self.select)
        self.select_size = len(self.select)
        self.layer_seq = []    # ('conv', cin, cout) / ('relu',) / ('pool',)
        self.params = {}       # conv layer idx -> (w2d bf16 (9Cin,Cout), b f32 (1,Cout))
        self.w_hwio = {}       # conv layer idx -> w bf16 (3,3,Cin,Cout) (reference)
        cin = 3
        for v in VGG16_CFG:
            if v == "M":
                self.layer_seq.append(("pool",))
            else:
                i = len(self.layer_seq)
                key, wk, bk = jax.random.split(key, 3)
                w = (jax.random.normal(wk, (3, 3, cin, v), jnp.float32)
                     * np.sqrt(2.0 / (9 * cin)).astype(np.float32)).astype(DTYPE)
                b = jax.random.normal(bk, (1, v), jnp.float32) * 0.01
                self.w_hwio[i] = w
                self.params[i] = (w.reshape(9 * cin, v), b)
                self.layer_seq.append(("conv", cin, v))
                self.layer_seq.append(("relu",))
                cin = v
        self.plan = self._build_plan()

    def _build_plan(self):
        """Static fusion plan mirroring the PyTorch loop (incl. early return)."""
        seq = self.layer_seq
        plan = []              # (op, conv_idx, relu_flag, pool_mode, emit_idxs)
        i, collected = 0, 0
        while i < len(seq) and collected < self.select_size:
            kind = seq[i][0]
            if kind == "conv":
                if i in self.select_set:   # pre-ReLU output needed: no fusion
                    plan.append(("conv", i, False, "none", (i,)))
                    collected += 1
                    i += 1
                    continue
                relu_idx = i + 1
                relu_sel = relu_idx in self.select_set
                done_after_relu = collected + (1 if relu_sel else 0) >= self.select_size
                pool_idx = relu_idx + 1
                pool_follows = pool_idx < len(seq) and seq[pool_idx][0] == "pool"
                if pool_follows and not done_after_relu:
                    if relu_sel:
                        plan.append(("conv", i, True, "both", (relu_idx, pool_idx)))
                    else:
                        plan.append(("conv", i, True, "only", (pool_idx,)))
                    collected += (1 if relu_sel else 0)
                    collected += (1 if pool_idx in self.select_set else 0)
                    i = pool_idx + 1
                else:
                    plan.append(("conv", i, True, "none", (relu_idx,)))
                    collected += (1 if relu_sel else 0)
                    i = relu_idx + 1
            elif kind == "relu":
                plan.append(("relu", None, None, None, (i,)))
                collected += (1 if i in self.select_set else 0)
                i += 1
            else:
                plan.append(("pool", None, None, None, (i,)))
                collected += (1 if i in self.select_set else 0)
                i += 1
        return plan

    def __call__(self, x):
        features = []
        for op, idx, relu_flag, pool_mode, emit in self.plan:
            if op == "conv":
                w2d, b = self.params[idx]
                out = conv3x3_fused(x, w2d, b, relu=relu_flag, pool=pool_mode)
                if pool_mode == "both":
                    outs = list(out)          # (relu feature, pooled activation)
                    x = outs[1]
                else:
                    outs = [out]
                    x = out
            elif op == "relu":
                x = relu_op(x)
                outs = [x]
            else:
                x = maxpool_op(x)
                outs = [x]
            for layer_idx, t in zip(emit, outs):
                if layer_idx in self.select_set:
                    features.append(t)
                    if len(features) >= self.select_size:
                        return features
        return features


# --------------------------- pure-JAX reference ------------------------------
def reference_forward(model, x):
    """Layer-by-layer reference with identical bf16 storage / f32 accumulation."""
    features = []
    n = 0
    for i, layer in enumerate(model.layer_seq):
        kind = layer[0]
        if kind == "conv":
            w = model.w_hwio[i]
            b = model.params[i][1]
            y = jax.lax.conv_general_dilated(
                x, w, window_strides=(1, 1), padding="SAME",
                dimension_numbers=("NHWC", "HWIO", "NHWC"),
                preferred_element_type=jnp.float32)
            x = (y + b[0]).astype(DTYPE)
        elif kind == "relu":
            x = jnp.maximum(x, 0).astype(DTYPE)
        else:
            N, H, W, C = x.shape
            x = x.reshape(N, H // 2, 2, W // 2, 2, C).max(axis=(2, 4))
        if i in model.select_set:
            n += 1
            features.append(x)
        if n >= model.select_size:
            return features
    return features


if __name__ == "__main__":
    key = jax.random.PRNGKey(0)
    key, xkey, pkey = jax.random.split(key, 3)

    # PyTorch-style NCHW input, transposed to the kernel's NHWC layout (bf16).
    x_nchw = jax.random.normal(xkey, (2, 3, 16, 16), jnp.float32)
    x = jnp.transpose(x_nchw, (0, 2, 3, 1)).astype(DTYPE)

    # Common perceptual-loss selection: relu1_2, relu2_2, relu3_3, relu4_3.
    select = (3, 8, 15, 22)
    model = VggNetPallas(select, pkey)

    feats = jax.block_until_ready(model(x))
    refs = reference_forward(model, x)

    assert len(feats) == len(select)
    for f, r in zip(feats, refs):
        np.testing.assert_allclose(
            np.asarray(f.astype(jnp.float32)),
            np.asarray(r.astype(jnp.float32)),
            rtol=3e-2, atol=3e-2)

    print("KERNEL_OK")
</pallas_src>

<mosaic_0001>
module attributes {stable_mosaic.version = 11 : i64} {
  func.func @_conv3x3_kernel(%arg0: i32, %arg1: memref<1x16x16x3xbf16, #tpu.memory_space<vmem>>, %arg2: memref<27x64xbf16, #tpu.memory_space<vmem>>, %arg3: memref<1x64xf32, #tpu.memory_space<vmem>>, %arg4: memref<1x16x16x64xbf16, #tpu.memory_space<vmem>>, %arg5: memref<18x18x3xf32, #tpu.memory_space<vmem>>) attributes {dimension_semantics = [#tpu.dimension_semantics<parallel>], iteration_bounds = array<i64: 2>, scalar_prefetch = 0 : i64, scratch_operands = 1 : i64, tpu.core_type = #tpu.core_type<tc>, window_params = [{transform_indices = @transform_0, window_bounds = array<i64: 1, 16, 16, 3>}, {pipeline_mode = #tpu.pipeline_mode<synchronous>, transform_indices = @transform_1, window_bounds = array<i64: 27, 64>}, {pipeline_mode = #tpu.pipeline_mode<synchronous>, transform_indices = @transform_2, window_bounds = array<i64: 1, 64>}, {transform_indices = @transform_3, window_bounds = array<i64: 1, 16, 16, 64>}]} {
    %cst = arith.constant 0.000000e+00 : f32
    %0 = vector.broadcast %cst : f32 to vector<18x18x3xf32>
    %c0 = arith.constant 0 : index
    %c0_0 = arith.constant 0 : index
    %c0_1 = arith.constant 0 : index
    %1 = vector.load %arg5[%c0, %c0_0, %c0_1] : memref<18x18x3xf32, #tpu.memory_space<vmem>>, vector<18x18x3xf32>
    tpu.vector_store %arg5[%c0, %c0_0, %c0_1], %0 {strides = array<i32>} : memref<18x18x3xf32, #tpu.memory_space<vmem>>, vector<18x18x3xf32>,
    %c0_2 = arith.constant 0 : index
    %c0_3 = arith.constant 0 : index
    %c0_4 = arith.constant 0 : index
    %c0_5 = arith.constant 0 : index
    %2 = vector.load %arg1[%c0_2, %c0_3, %c0_4, %c0_5] : memref<1x16x16x3xbf16, #tpu.memory_space<vmem>>, vector<1x16x16x3xbf16>
    %3 = vector.shape_cast %2 : vector<1x16x16x3xbf16> to vector<16x16x3xbf16>
    %4 = arith.extf %3 : vector<16x16x3xbf16> to vector<16x16x3xf32>
    %c1 = arith.constant 1 : index
    %c1_6 = arith.constant 1 : index
    %c0_7 = arith.constant 0 : index
    %5 = vector.load %arg5[%c1, %c1_6, %c0_7] : memref<18x18x3xf32, #tpu.memory_space<vmem>>, vector<16x16x3xf32>
    tpu.vector_store %arg5[%c1, %c1_6, %c0_7], %4 {strides = array<i32>} : memref<18x18x3xf32, #tpu.memory_space<vmem>>, vector<16x16x3xf32>,
    %c0_8 = arith.constant 0 : index
    %c0_9 = arith.constant 0 : index
    %c0_10 = arith.constant 0 : index
    %6 = vector.load %arg5[%c0_8, %c0_9, %c0_10] : memref<18x18x3xf32, #tpu.memory_space<vmem>>, vector<16x16x3xf32>
    %7 = vector.shape_cast %6 : vector<16x16x3xf32> to vector<256x3xf32>
    %c0_11 = arith.constant 0 : index
    %c1_12 = arith.constant 1 : index
    %c0_13 = arith.constant 0 : index
    %8 = vector.load %arg5[%c0_11, %c1_12, %c0_13] : memref<18x18x3xf32, #tpu.memory_space<vmem>>, vector<16x16x3xf32>
    %9 = vector.shape_cast %8 : vector<16x16x3xf32> to vector<256x3xf32>
    %c0_14 = arith.constant 0 : index
    %c2 = arith.constant 2 : index
    %c0_15 = arith.constant 0 : index
    %10 = vector.load %arg5[%c0_14, %c2, %c0_15] : memref<18x18x3xf32, #tpu.memory_space<vmem>>, vector<16x16x3xf32>
    %11 = vector.shape_cast %10 : vector<16x16x3xf32> to vector<256x3xf32>
    %c1_16 = arith.constant 1 : index
    %c0_17 = arith.constant 0 : index
    %c0_18 = arith.constant 0 : index
    %12 = vector.load %arg5[%c1_16, %c0_17, %c0_18] : memref<18x18x3xf32, #tpu.memory_space<vmem>>, vector<16x16x3xf32>
    %13 = vector.shape_cast %12 : vector<16x16x3xf32> to vector<256x3xf32>
    %c1_19 = arith.constant 1 : index
    %c1_20 = arith.constant 1 : index
    %c0_21 = arith.constant 0 : index
    %14 = vector.load %arg5[%c1_19, %c1_20, %c0_21] : memref<18x18x3xf32, #tpu.memory_space<vmem>>, vector<16x16x3xf32>
    %15 = vector.shape_cast %14 : vector<16x16x3xf32> to vector<256x3xf32>
    %c1_22 = arith.constant 1 : index
    %c2_23 = arith.constant 2 : index
    %c0_24 = arith.constant 0 : index
    %16 = vector.load %arg5[%c1_22, %c2_23, %c0_24] : memref<18x18x3xf32, #tpu.memory_space<vmem>>, vector<16x16x3xf32>
    %17 = vector.shape_cast %16 : vector<16x16x3xf32> to vector<256x3xf32>
    %c2_25 = arith.constant 2 : index
    %c0_26 = arith.constant 0 : index
    %c0_27 = arith.constant 0 : index
    %18 = vector.load %arg5[%c2_25, %c0_26, %c0_27] : memref<18x18x3xf32, #tpu.memory_space<vmem>>, vector<16x16x3xf32>
    %19 = vector.shape_cast %18 : vector<16x16x3xf32> to vector<256x3xf32>
    %c2_28 = arith.constant 2 : index
    %c1_29 = arith.constant 1 : index
    %c0_30 = arith.constant 0 : index
    %20 = vector.load %arg5[%c2_28, %c1_29, %c0_30] : memref<18x18x3xf32, #tpu.memory_space<vmem>>, vector<16x16x3xf32>
    %21 = vector.shape_cast %20 : vector<16x16x3xf32> to vector<256x3xf32>
    %c2_31 = arith.constant 2 : index
    %c2_32 = arith.constant 2 : index
    %c0_33 = arith.constant 0 : index
    %22 = vector.load %arg5[%c2_31, %c2_32, %c0_33] : memref<18x18x3xf32, #tpu.memory_space<vmem>>, vector<16x16x3xf32>
    %23 = vector.shape_cast %22 : vector<16x16x3xf32> to vector<256x3xf32>
    %24 = tpu.concatenate %7, %9, %11, %13, %15, %17, %19, %21, %23 in 1 : vector<256x3xf32>, vector<256x3xf32>, vector<256x3xf32>, vector<256x3xf32>, vector<256x3xf32>, vector<256x3xf32>, vector<256x3xf32>, vector<256x3xf32>, vector<256x3xf32> -> vector<256x27xf32>
    %25 = arith.truncf %24 : vector<256x27xf32> to vector<256x27xbf16>
    %c0_34 = arith.constant 0 : index
    %c0_35 = arith.constant 0 : index
    %26 = vector.load %arg2[%c0_34, %c0_35] : memref<27x64xbf16, #tpu.memory_space<vmem>>, vector<27x64xbf16>
    %cst_36 = arith.constant dense<0.000000e+00> : vector<256x64xf32>
    %27 = tpu.matmul %25, %26, %cst_36 {dimension_numbers = #tpu.dot_dimension_numbers<[1], [0], [0], [1], [0, 0, 1, 1], [], []>} : vector<256x27xbf16>, vector<27x64xbf16>, vector<256x64xf32> -> vector<256x64xf32>
    %c0_37 = arith.constant 0 : index
    %c0_38 = arith.constant 0 : index
    %28 = vector.load %arg3[%c0_37, %c0_38] : memref<1x64xf32, #tpu.memory_space<vmem>>, vector<1x64xf32>
    %29 = vector.shape_cast %28 : vector<1x64xf32> to vector<64xf32>
    %30 = vector.shape_cast %29 : vector<64xf32> to vector<1x64xf32>
    %31 = vector.broadcast %30 : vector<1x64xf32> to vector<256x64xf32>
    %32 = arith.addf %27, %31 : vector<256x64xf32>
    %cst_39 = arith.constant 0.000000e+00 : f32
    %33 = vector.broadcast %cst_39 : f32 to vector<256x64xf32>
    %34 = arith.maximumf %32, %33 : vector<256x64xf32>
    %35 = vector.shape_cast %34 : vector<256x64xf32> to vector<1x16x16x64xf32>
    %36 = arith.truncf %35 : vector<1x16x16x64xf32> to vector<1x16x16x64xbf16>
    %c0_40 = arith.constant 0 : index
    %c0_41 = arith.constant 0 : index
    %c0_42 = arith.constant 0 : index
    %c0_43 = arith.constant 0 : index
    %37 = vector.load %arg4[%c0_40, %c0_41, %c0_42, %c0_43] : memref<1x16x16x64xbf16, #tpu.memory_space<vmem>>, vector<1x16x16x64xbf16>
    tpu.vector_store %arg4[%c0_40, %c0_41, %c0_42, %c0_43], %36 {strides = array<i32>} : memref<1x16x16x64xbf16, #tpu.memory_space<vmem>>, vector<1x16x16x64xbf16>,
    return
  }
  func.func @transform_0(%arg0: i32) -> (i32, i32, i32, i32) {
    %c0_i32 = arith.constant 0 : i32
    %c0_i32_0 = arith.constant 0 : i32
    %c0_i32_1 = arith.constant 0 : i32
    %c0_i32_2 = arith.constant 0 : i32
    return %arg0, %c0_i32, %c0_i32_0, %c0_i32_1 : i32, i32, i32, i32
  }
  func.func @transform_1(%arg0: i32) -> (i32, i32) {
    %c0_i32 = arith.constant 0 : i32
    %c0_i32_0 = arith.constant 0 : i32
    %c0_i32_1 = arith.constant 0 : i32
    return %c0_i32, %c0_i32_0 : i32, i32
  }
  func.func @transform_2(%arg0: i32) -> (i32, i32) {
    %c0_i32 = arith.constant 0 : i32
    %c0_i32_0 = arith.constant 0 : i32
    %c0_i32_1 = arith.constant 0 : i32
    return %c0_i32, %c0_i32_0 : i32, i32
  }
  func.func @transform_3(%arg0: i32) -> (i32, i32, i32, i32) {
    %c0_i32 = arith.constant 0 : i32
    %c0_i32_0 = arith.constant 0 : i32
    %c0_i32_1 = arith.constant 0 : i32
    %c0_i32_2 = arith.constant 0 : i32
    return %arg0, %c0_i32, %c0_i32_0, %c0_i32_1 : i32, i32, i32, i32
  }
}

</mosaic_0001>

<llo_original>
// kernel: tpu_custom_call.1
$region0: #{tpu_custom_call.1}
  #allocation0 [shape = 'u32[]', space=smem, size = 0x4, offset = 0x4, fixed_abs, tag = 'smem constant byte address 0x4 - core index']
  #allocation1 [shape = 'u32[144,128]{1,0:T(1,128)}', space=vmem, size = 0x12000, scoped, tag = 'internal scratch']
  #allocation2 [shape = 'f32[18,18,3]{2,1,0:T(8,128)}', space=vmem, size = 0x36000, scoped, tag = 'scratch operand']
  %s0 = inlined_call_operand.vmem [shape: bf16[2,16,16,3], index: 0, kind: input, shape index: {}]
  %s1 = inlined_call_operand.vmem [shape: bf16[27,64], index: 1, kind: input, shape index: {}]
  %s2 = inlined_call_operand.vmem [shape: f32[1,64], index: 2, kind: input, shape index: {}]
  %s3 = inlined_call_operand.hbm [shape: bf16[2,16,16,64], index: 3, kind: output, shape index: {}]
  %s4 = sld [smem:[#allocation0]]
  $region45: #{tpu_custom_call.1} parent=0
    _
  %s6 = ssub.s32 1, %s4
  %s7 = scalar_select 0, %s6, %s4
  $region1: #{tpu_custom_call.1} parent=0
    #allocation3 [shape = 'u8[131072]{0}', space=vmem, size = 0x20000, scoped, tag = 'output window, operand 0']
    #allocation4 [shape = 's32[2]{0}', space=sflag, size = 0x8, scoped, tag = 'scoped memory for tpu_custom_call.1']
    %8 = vsyncpa [#allocation4], 0
    %s9 = scalar_lea.sflag [#allocation4], 1
    %10 = vsyncpa %s9, 0
    loop: start=0, step=1, limit=4
    $region2: #{tpu_custom_call.1} parent=1 // loop_pre_header
      _
    $region3: #{tpu_custom_call.1} parent=1 // loop_header
      %s12 = sphi 0, %s16
      %p13 = scmp.ge.s32.totalorder %s12, 4
      %s22 = sphi 0, %s24
      %s25 = sphi 0, %s22
      %s26 = sphi 0, %s25
      %s42 = sphi 0, %s26
      %s46 = sphi 0, %s46
      %s48 = sphi 0, %s46
      %s49 = sphi 0, %s48
      %s63 = sphi 0, %s49
      %s67 = sphi 0, %s67
      %s69 = sphi 0, %s67
      %s70 = sphi 0, %s69
      %s84 = sphi 0, %s70
      %s90 = sphi 0, %s92
      %s93 = sphi 0, %s90
      %s94 = sphi 0, %s93
      %s110 = sphi 0, %s94
    $region4: #{tpu_custom_call.1} parent=1 // loop_header_branch
      %15 = sbr.rel (%p13) target = $region8
    $region5: #{tpu_custom_call.1} parent=1 // loop_body
      %s17 = ssub.s32 %s12, 1
      %s18 = ssub.s32 %s12, 2
      %s19 = sadd.s32 %s12, 1
      %s20 = ssub.s32 %s12, %s19
      %p21 = scmp.eq.s32.totalorder %s20, 0
      %s23 = sadd.s32 %s22, 1
      %s24 = scalar_select %p21, %s22, %s23
      %p27 = pneg %p21
      %p28 = scmp.eq.s32.totalorder %s12, 1
      %p29 = por %p27, %p28
      %p30 = scmp.ne.s32.totalorder %s22, %s25
      %p31 = scmp.eq.s32.totalorder %s12, 0
      %p32 = por %p30, %p31
      %p33 = scmp.ne.s32.totalorder %s22, %s25
      %p34 = scmp.eq.s32.totalorder %s17, 1
      %p35 = por %p33, %p34
      %p36 = scmp.ne.s32.totalorder %s25, %s26
      %p37 = scmp.eq.s32.totalorder %s17, 0
      %p38 = por %p36, %p37
      %p39 = scmp.ne.s32.totalorder %s25, %s26
      %p40 = scmp.eq.s32.totalorder %s18, 1
      %p41 = por %p39, %p40
      %p43 = scmp.ne.s32.totalorder %s26, %s42
      %p44 = scmp.eq.s32.totalorder %s18, 0
      %p45 = por %p43, %p44
      %s47 = sadd.s32 %s46, 1
      %p50 = scmp.eq.s32.totalorder %s12, 1
      %p51 = scmp.ne.s32.totalorder %s46, %s48
      %p52 = scmp.eq.s32.totalorder %s12, 0
      %p53 = por %p51, %p52
      %p54 = scmp.ne.s32.totalorder %s46, %s48
      %p55 = scmp.eq.s32.totalorder %s17, 1
      %p56 = por %p54, %p55
      %p57 = scmp.ne.s32.totalorder %s48, %s49
      %p58 = scmp.eq.s32.totalorder %s17, 0
      %p59 = por %p57, %p58
      %p60 = scmp.ne.s32.totalorder %s48, %s49
      %p61 = scmp.eq.s32.totalorder %s18, 1
      %p62 = por %p60, %p61
      %p64 = scmp.ne.s32.totalorder %s49, %s63
      %p65 = scmp.eq.s32.totalorder %s18, 0
      %p66 = por %p64, %p65
      %s68 = sadd.s32 %s67, 1
      %p71 = scmp.eq.s32.totalorder %s12, 1
      %p72 = scmp.ne.s32.totalorder %s67, %s69
      %p73 = scmp.eq.s32.totalorder %s12, 0
      %p74 = por %p72, %p73
      %p75 = scmp.ne.s32.totalorder %s67, %s69
      %p76 = scmp.eq.s32.totalorder %s17, 1
      %p77 = por %p75, %p76
      %p78 = scmp.ne.s32.totalorder %s69, %s70
      %p79 = scmp.eq.s32.totalorder %s17, 0
      %p80 = por %p78, %p79
      %p81 = scmp.ne.s32.totalorder %s69, %s70
      %p82 = scmp.eq.s32.totalorder %s18, 1
      %p83 = por %p81, %p82
      %p85 = scmp.ne.s32.totalorder %s70, %s84
      %p86 = scmp.eq.s32.totalorder %s18, 0
      %p87 = por %p85, %p86
      %s88 = ssub.s32 %s12, %s19
      %p89 = scmp.eq.s32.totalorder %s88, 0
      %s91 = sadd.s32 %s90, 1
      %s92 = scalar_select %p89, %s90, %s91
      %p95 = pneg %p89
      %p96 = scmp.eq.s32.totalorder %s12, 1
      %p97 = por %p95, %p96
      %p98 = scmp.ne.s32.totalorder %s90, %s93
      %p99 = scmp.eq.s32.totalorder %s12, 0
      %p100 = por %p98, %p99
      %p101 = scmp.ne.s32.totalorder %s90, %s93
      %p102 = scmp.eq.s32.totalorder %s17, 1
      %p103 = por %p101, %p102
      %p104 = scmp.ne.s32.totalorder %s93, %s94
      %p105 = scmp.eq.s32.totalorder %s17, 0
      %p106 = por %p104, %p105
      %p107 = scmp.ne.s32.totalorder %s93, %s94
      %p108 = scmp.eq.s32.totalorder %s18, 1
      %p109 = por %p107, %p108
      %p111 = scmp.ne.s32.totalorder %s94, %s110
      %p112 = scmp.eq.s32.totalorder %s18, 0
      %p113 = por %p111, %p112
      %p114 = scmp.le.s32.totalorder 1, %s12
      %p115 = scmp.lt.s32.totalorder %s12, 3
      %p116 = pnand %p114, %p115
      %p117 = pneg %p116
      // Predicated region
      $region9: #{tpu_custom_call.1} parent=5 // pred_check
        _
      $region10: #{tpu_custom_call.1} parent=5 // pred_check_branch
        %119 = sbr.rel (%p116) target = $region12
      $region11: #{tpu_custom_call.1} parent=5 // pred_region
        %s120 = ssub.s32 %s12, 1
        // Predicated region
        $region13: #{tpu_custom_call.1} parent=11 // pred_check
          %p121 = pneg %p59
        $region14: #{tpu_custom_call.1} parent=11 // pred_check_branch
          %123 = sbr.rel (%p121) target = $region16
        $region15: #{tpu_custom_call.1} parent=11 // pred_region
          _
        $region16: #{tpu_custom_call.1} parent=11 // pred_fallthru
          _
        // Predicated region
        $region17: #{tpu_custom_call.1} parent=11 // pred_check
          %p124 = pneg %p80
        $region18: #{tpu_custom_call.1} parent=11 // pred_check_branch
          %126 = sbr.rel (%p124) target = $region20
        $region19: #{tpu_custom_call.1} parent=11 // pred_region
          _
        $region20: #{tpu_custom_call.1} parent=11 // pred_fallthru
          _
      $region12: #{tpu_custom_call.1} parent=5 // pred_fallthru
        _
      %p127 = scmp.lt.s32.totalorder %s12, 2
      // Predicated region
      $region21: #{tpu_custom_call.1} parent=5 // pred_check
        %p128 = pneg %p127
      $region22: #{tpu_custom_call.1} parent=5 // pred_check_branch
        %130 = sbr.rel (%p128) target = $region24
      $region23: #{tpu_custom_call.1} parent=5 // pred_region
        // Predicated region
        $region25: #{tpu_custom_call.1} parent=23 // pred_check
          %p131 = pneg %p32
        $region26: #{tpu_custom_call.1} parent=23 // pred_check_branch
          %133 = sbr.rel (%p131) target = $region28
        $region27: #{tpu_custom_call.1} parent=23 // pred_region
          %p134 = scmp.lt.s32.totalorder %s12, 1
          %s135 = scalar_select %p134, %s12, 1
          %s136 = smul.addr %s135, 32
          %s137 = smul.addr %s136, 4
          %s138 = scalar_lea.vmem %s0, %s137
        $region28: #{tpu_custom_call.1} parent=23 // pred_fallthru
          _
      $region24: #{tpu_custom_call.1} parent=5 // pred_fallthru
        _
      %p139 = scmp.le.s32.totalorder 1, %s12
      %p140 = scmp.lt.s32.totalorder %s12, 3
      %p141 = pnand %p139, %p140
      %p142 = pneg %p141
      // Predicated region
      $region29: #{tpu_custom_call.1} parent=5 // pred_check
        _
      $region30: #{tpu_custom_call.1} parent=5 // pred_check_branch
        %144 = sbr.rel (%p141) target = $region32
      $region31: #{tpu_custom_call.1} parent=5 // pred_region
        %s145 = ssub.s32 %s12, 1
        %p146 = scmp.lt.s32.totalorder %s17, 1
        %s147 = scalar_select %p146, %s17, 1
        %s148 = smul.addr %s147, 32
        %s149 = smul.addr %s148, 4
        %s150 = scalar_lea.vmem %s0, %s149
        %p151 = pneg %p38
        %p152 = pneg %p35
        %p153 = pneg %p59
        %p154 = pneg %p56
        %p155 = pneg %p80
        %p156 = pneg %p77
        %p157 = pneg %p106
        %p158 = pneg %p103
        %s159 = sand.u32 %s93, 1
        %s160 = scalar_lea.sflag [#allocation4], %s159
        %s161 = sand.u32 %s93, 1
        %s162 = smul.addr %s161, 128
        %s163 = scalar_lea.vmem [#allocation3], %s162
        %p164 = scmp.lt.s32.totalorder %s17, 1
        %s165 = scalar_select %p164, %s17, 1
        %s166 = smul.addr %s165, 32
        %s167 = smul.addr %s166, 4
        %s168 = scalar_lea.vmem %s0, %s167
        %vm170 = vcmask 23552
        %171 = vst.msk [vmem:[#allocation2] sm:$0xff] %vm170, 0.0
        %172 = vst.msk [vmem:[#allocation2 + $0x8] sm:$0xff] %vm170, 0.0
        %vm173 = vcmask 17408
        %174 = vst.msk [vmem:[#allocation2 + $0x10] sm:$0x3] %vm173, 0.0
        %175 = vst.msk [vmem:[#allocation2 + $0x18] sm:$0xff] %vm170, 0.0
        %176 = vst.msk [vmem:[#allocation2 + $0x20] sm:$0xff] %vm170, 0.0
        %177 = vst.msk [vmem:[#allocation2 + $0x28] sm:$0x3] %vm173, 0.0
        %178 = vst.msk [vmem:[#allocation2 + $0x30] sm:$0xff] %vm170, 0.0
        %179 = vst.msk [vmem:[#allocation2 + $0x38] sm:$0xff] %vm170, 0.0
        %180 = vst.msk [vmem:[#allocation2 + $0x40] sm:$0x3] %vm173, 0.0
        %181 = vst.msk [vmem:[#allocation2 + $0x48] sm:$0xff] %vm170, 0.0
        %182 = vst.msk [vmem:[#allocation2 + $0x50] sm:$0xff] %vm170, 0.0
        %183 = vst.msk [vmem:[#allocation2 + $0x58] sm:$0x3] %vm173, 0.0
        %184 = vst.msk [vmem:[#allocation2 + $0x60] sm:$0xff] %vm170, 0.0
        %185 = vst.msk [vmem:[#allocation2 + $0x68] sm:$0xff] %vm170, 0.0
        %186 = vst.msk [vmem:[#allocation2 + $0x70] sm:$0x3] %vm173, 0.0
        %187 = vst.msk [vmem:[#allocation2 + $0x78] sm:$0xff] %vm170, 0.0
        %188 = vst.msk [vmem:[#allocation2 + $0x80] sm:$0xff] %vm170, 0.0
        %189 = vst.msk [vmem:[#allocation2 + $0x88] sm:$0x3] %vm173, 0.0
        %190 = vst.msk [vmem:[#allocation2 + $0x90] sm:$0xff] %vm170, 0.0
        %191 = vst.msk [vmem:[#allocation2 + $0x98] sm:$0xff] %vm170, 0.0
        %192 = vst.msk [vmem:[#allocation2 + $0xa0] sm:$0x3] %vm173, 0.0
        %193 = vst.msk [vmem:[#allocation2 + $0xa8] sm:$0xff] %vm170, 0.0
        %194 = vst.msk [vmem:[#allocation2 + $0xb0] sm:$0xff] %vm170, 0.0
        %195 = vst.msk [vmem:[#allocation2 + $0xb8] sm:$0x3] %vm173, 0.0
        %196 = vst.msk [vmem:[#allocation2 + $0xc0] sm:$0xff] %vm170, 0.0
        %197 = vst.msk [vmem:[#allocation2 + $0xc8] sm:$0xff] %vm170, 0.0
        %198 = vst.msk [vmem:[#allocation2 + $0xd0] sm:$0x3] %vm173, 0.0
        %199 = vst.msk [vmem:[#allocation2 + $0xd8] sm:$0xff] %vm170, 0.0
        %200 = vst.msk [vmem:[#allocation2 + $0xe0] sm:$0xff] %vm170, 0.0
        %201 = vst.msk [vmem:[#allocation2 + $0xe8] sm:$0x3] %vm173, 0.0
        %202 = vst.msk [vmem:[#allocation2 + $0xf0] sm:$0xff] %vm170, 0.0
        %203 = vst.msk [vmem:[#allocation2 + $0xf8] sm:$0xff] %vm170, 0.0
        %204 = vst.msk [vmem:[#allocation2 + $0x100] sm:$0x3] %vm173, 0.0
        %205 = vst.msk [vmem:[#allocation2 + $0x108] sm:$0xff] %vm170, 0.0
        %206 = vst.msk [vmem:[#allocation2 + $0x110] sm:$0xff] %vm170, 0.0
        %207 = vst.msk [vmem:[#allocation2 + $0x118] sm:$0x3] %vm173, 0.0
        %208 = vst.msk [vmem:[#allocation2 + $0x120] sm:$0xff] %vm170, 0.0
        %209 = vst.msk [vmem:[#allocation2 + $0x128] sm:$0xff] %vm170, 0.0
        %210 = vst.msk [vmem:[#allocation2 + $0x130] sm:$0x3] %vm173, 0.0
        %211 = vst.msk [vmem:[#allocation2 + $0x138] sm:$0xff] %vm170, 0.0
        %212 = vst.msk [vmem:[#allocation2 + $0x140] sm:$0xff] %vm170, 0.0
        %213 = vst.msk [vmem:[#allocation2 + $0x148] sm:$0x3] %vm173, 0.0
        %214 = vst.msk [vmem:[#allocation2 + $0x150] sm:$0xff] %vm170, 0.0
        %215 = vst.msk [vmem:[#allocation2 + $0x158] sm:$0xff] %vm170, 0.0
        %216 = vst.msk [vmem:[#allocation2 + $0x160] sm:$0x3] %vm173, 0.0
        %217 = vst.msk [vmem:[#allocation2 + $0x168] sm:$0xff] %vm170, 0.0
        %218 = vst.msk [vmem:[#allocation2 + $0x170] sm:$0xff] %vm170, 0.0
        %219 = vst.msk [vmem:[#allocation2 + $0x178] sm:$0x3] %vm173, 0.0
        %220 = vst.msk [vmem:[#allocation2 + $0x180] sm:$0xff] %vm170, 0.0
        %221 = vst.msk [vmem:[#allocation2 + $0x188] sm:$0xff] %vm170, 0.0
        %222 = vst.msk [vmem:[#allocation2 + $0x190] sm:$0x3] %vm173, 0.0
        %223 = vst.msk [vmem:[#allocation2 + $0x198] sm:$0xff] %vm170, 0.0
        %224 = vst.msk [vmem:[#allocation2 + $0x1a0] sm:$0xff] %vm170, 0.0
        %225 = vst.msk [vmem:[#allocation2 + $0x1a8] sm:$0x3] %vm173, 0.0
        %v226 = vld [vmem:[%s168] sm:$0xf]
        %v227 = vld [vmem:[%s168 + $0x4] sm:$0xf]
        %v228 = vld [vmem:[%s168 + $0x8] sm:$0xf]
        %v229 = vld [vmem:[%s168 + $0xc] sm:$0xf]
        %v230 = vld [vmem:[%s168 + $0x10] sm:$0xf]
        %v231 = vld [vmem:[%s168 + $0x14] sm:$0xf]
        %v232 = vld [vmem:[%s168 + $0x18] sm:$0xf]
        %v233 = vld [vmem:[%s168 + $0x1c] sm:$0xf]
        %v234 = vld [vmem:[%s168 + $0x20] sm:$0xf]
        %v235 = vld [vmem:[%s168 + $0x24] sm:$0xf]
        %v236 = vld [vmem:[%s168 + $0x28] sm:$0xf]
        %v237 = vld [vmem:[%s168 + $0x2c] sm:$0xf]
        %v238 = vld [vmem:[%s168 + $0x30] sm:$0xf]
        %v239 = vld [vmem:[%s168 + $0x34] sm:$0xf]
        %v240 = vld [vmem:[%s168 + $0x38] sm:$0xf]
        %v241 = vld [vmem:[%s168 + $0x3c] sm:$0xf]
        %v242 = vld [vmem:[%s168 + $0x40] sm:$0xf]
        %v243 = vld [vmem:[%s168 + $0x44] sm:$0xf]
        %v244 = vld [vmem:[%s168 + $0x48] sm:$0xf]
        %v245 = vld [vmem:[%s168 + $0x4c] sm:$0xf]
        %v246 = vld [vmem:[%s168 + $0x50] sm:$0xf]
        %v247 = vld [vmem:[%s168 + $0x54] sm:$0xf]
        %v248 = vld [vmem:[%s168 + $0x58] sm:$0xf]
        %v249 = vld [vmem:[%s168 + $0x5c] sm:$0xf]
        %v250 = vld [vmem:[%s168 + $0x60] sm:$0xf]
        %v251 = vld [vmem:[%s168 + $0x64] sm:$0xf]
        %v252 = vld [vmem:[%s168 + $0x68] sm:$0xf]
        %v253 = vld [vmem:[%s168 + $0x6c] sm:$0xf]
        %v254 = vld [vmem:[%s168 + $0x70] sm:$0xf]
        %v255 = vld [vmem:[%s168 + $0x74] sm:$0xf]
        %v256 = vld [vmem:[%s168 + $0x78] sm:$0xf]
        %v257 = vld [vmem:[%s168 + $0x7c] sm:$0xf]
        %v258 = vunpack.c.l.bf16 %v226
        %v259 = vunpack.c.l.bf16 %v227
        %v260 = vunpack.c.l.bf16 %v228
        %v261 = vunpack.c.l.bf16 %v229
        %v262 = vunpack.c.l.bf16 %v230
        %v263 = vunpack.c.l.bf16 %v231
        %v264 = vunpack.c.l.bf16 %v232
        %v265 = vunpack.c.l.bf16 %v233
        %v266 = vunpack.c.l.bf16 %v234
        %v267 = vunpack.c.l.bf16 %v235
        %v268 = vunpack.c.l.bf16 %v236
        %v269 = vunpack.c.l.bf16 %v237
        %v270 = vunpack.c.l.bf16 %v238
        %v271 = vunpack.c.l.bf16 %v239
        %v272 = vunpack.c.l.bf16 %v240
        %v273 = vunpack.c.l.bf16 %v241
        %v274 = vunpack.c.l.bf16 %v242
        %v275 = vunpack.c.l.bf16 %v243
        %v276 = vunpack.c.l.bf16 %v244
        %v277 = vunpack.c.l.bf16 %v245
        %v278 = vunpack.c.l.bf16 %v246
        %v279 = vunpack.c.l.bf16 %v247
        %v280 = vunpack.c.l.bf16 %v248
        %v281 = vunpack.c.l.bf16 %v249
        %v282 = vunpack.c.l.bf16 %v250
        %v283 = vunpack.c.l.bf16 %v251
        %v284 = vunpack.c.l.bf16 %v252
        %v285 = vunpack.c.l.bf16 %v253
        %v286 = vunpack.c.l.bf16 %v254
        %v287 = vunpack.c.l.bf16 %v255
        %v288 = vunpack.c.l.bf16 %v256
        %v289 = vunpack.c.l.bf16 %v257
        %s290 = scalar_lea.vmem [#allocation2], 24
        %291 = vst.msk [vmem:[%s290 + $0x1] sm:$0xff] %vm170, %v258
        %292 = vst.msk [vmem:[%s290 + $0x9] sm:$0xff] %vm170, %v259
        %293 = vst.msk [vmem:[%s290 + $0x19] sm:$0xff] %vm170, %v260
        %294 = vst.msk [vmem:[%s290 + $0x21] sm:$0xff] %vm170, %v261
        %295 = vst.msk [vmem:[%s290 + $0x31] sm:$0xff] %vm170, %v262
        %296 = vst.msk [vmem:[%s290 + $0x39] sm:$0xff] %vm170, %v263
        %297 = vst.msk [vmem:[%s290 + $0x49] sm:$0xff] %vm170, %v264
        %298 = vst.msk [vmem:[%s290 + $0x51] sm:$0xff] %vm170, %v265
        %299 = vst.msk [vmem:[%s290 + $0x61] sm:$0xff] %vm170, %v266
        %300 = vst.msk [vmem:[%s290 + $0x69] sm:$0xff] %vm170, %v267
        %301 = vst.msk [vmem:[%s290 + $0x79] sm:$0xff] %vm170, %v268
        %302 = vst.msk [vmem:[%s290 + $0x81] sm:$0xff] %vm170, %v269
        %303 = vst.msk [vmem:[%s290 + $0x91] sm:$0xff] %vm170, %v270
        %304 = vst.msk [vmem:[%s290 + $0x99] sm:$0xff] %vm170, %v271
        %305 = vst.msk [vmem:[%s290 + $0xa9] sm:$0xff] %vm170, %v272
        %306 = vst.msk [vmem:[%s290 + $0xb1] sm:$0xff] %vm170, %v273
        %307 = vst.msk [vmem:[%s290 + $0xc1] sm:$0xff] %vm170, %v274
        %308 = vst.msk [vmem:[%s290 + $0xc9] sm:$0xff] %vm170, %v275
        %309 = vst.msk [vmem:[%s290 + $0xd9] sm:$0xff] %vm170, %v276
        %310 = vst.msk [vmem:[%s290 + $0xe1] sm:$0xff] %vm170, %v277
        %311 = vst.msk [vmem:[%s290 + $0xf1] sm:$0xff] %vm170, %v278
        %312 = vst.msk [vmem:[%s290 + $0xf9] sm:$0xff] %vm170, %v279
        %313 = vst.msk [vmem:[%s290 + $0x109] sm:$0xff] %vm170, %v280
        %314 = vst.msk [vmem:[%s290 + $0x111] sm:$0xff] %vm170, %v281
        %315 = vst.msk [vmem:[%s290 + $0x121] sm:$0xff] %vm170, %v282
        %316 = vst.msk [vmem:[%s290 + $0x129] sm:$0xff] %vm170, %v283
        %317 = vst.msk [vmem:[%s290 + $0x139] sm:$0xff] %vm170, %v284
        %318 = vst.msk [vmem:[%s290 + $0x141] sm:$0xff] %vm170, %v285
        %319 = vst.msk [vmem:[%s290 + $0x151] sm:$0xff] %vm170, %v286
        %320 = vst.msk [vmem:[%s290 + $0x159] sm:$0xff] %vm170, %v287
        %321 = vst.msk [vmem:[%s290 + $0x169] sm:$0xff] %vm170, %v288
        %322 = vst.msk [vmem:[%s290 + $0x171] sm:$0xff] %vm170, %v289
        %v323 = vld [vmem:[#allocation2] sm:$0xff]
        %v324 = vld [vmem:[#allocation2 + $0x8] sm:$0xff]
        %v325 = vld [vmem:[#allocation2 + $0x18] sm:$0xff]
        %v326 = vld [vmem:[#allocation2 + $0x20] sm:$0xff]
        %v327 = vld [vmem:[#allocation2 + $0x30] sm:$0xff]
        %v328 = vld [vmem:[#allocation2 + $0x38] sm:$0xff]
        %v329 = vld [vmem:[#allocation2 + $0x48] sm:$0xff]
        %v330 = vld [vmem:[#allocation2 + $0x50] sm:$0xff]
        %v331 = vld [vmem:[#allocation2 + $0x60] sm:$0xff]
        %v332 = vld [vmem:[#allocation2 + $0x68] sm:$0xff]
        %v333 = vld [vmem:[#allocation2 + $0x78] sm:$0xff]
        %v334 = vld [vmem:[#allocation2 + $0x80] sm:$0xff]
        %v335 = vld [vmem:[#allocation2 + $0x90] sm:$0xff]
        %v336 = vld [vmem:[#allocation2 + $0x98] sm:$0xff]
        %v337 = vld [vmem:[#allocation2 + $0xa8] sm:$0xff]
        %v338 = vld [vmem:[#allocation2 + $0xb0] sm:$0xff]
        %v339 = vld [vmem:[#allocation2 + $0xc0] sm:$0xff]
        %v340 = vld [vmem:[#allocation2 + $0xc8] sm:$0xff]
        %v341 = vld [vmem:[#allocation2 + $0xd8] sm:$0xff]
        %v342 = vld [vmem:[#allocation2 + $0xe0] sm:$0xff]
        %v343 = vld [vmem:[#allocation2 + $0xf0] sm:$0xff]
        %v344 = vld [vmem:[#allocation2 + $0xf8] sm:$0xff]
        %v345 = vld [vmem:[#allocation2 + $0x108] sm:$0xff]
        %v346 = vld [vmem:[#allocation2 + $0x110] sm:$0xff]
        %v347 = vld [vmem:[#allocation2 + $0x120] sm:$0xff]
        %v348 = vld [vmem:[#allocation2 + $0x128] sm:$0xff]
        %v349 = vld [vmem:[#allocation2 + $0x138] sm:$0xff]
        %v350 = vld [vmem:[#allocation2 + $0x140] sm:$0xff]
        %v351 = vld [vmem:[#allocation2 + $0x150] sm:$0xff]
        %v352 = vld [vmem:[#allocation2 + $0x158] sm:$0xff]
        %v353 = vld [vmem:[#allocation2 + $0x168] sm:$0xff]
        %v354 = vld [vmem:[#allocation2 + $0x170] sm:$0xff]
        %v355 = vld [vmem:[#allocation2 + $0x1] sm:$0xff]
        %v356 = vld [vmem:[#allocation2 + $0x9] sm:$0xff]
        %v357 = vld [vmem:[#allocation2 + $0x19] sm:$0xff]
        %v358 = vld [vmem:[#allocation2 + $0x21] sm:$0xff]
        %v359 = vld [vmem:[#allocation2 + $0x31] sm:$0xff]
        %v360 = vld [vmem:[#allocation2 + $0x39] sm:$0xff]
        %v361 = vld [vmem:[#allocation2 + $0x49] sm:$0xff]
        %v362 = vld [vmem:[#allocation2 + $0x51] sm:$0xff]
        %v363 = vld [vmem:[#allocation2 + $0x61] sm:$0xff]
        %v364 = vld [vmem:[#allocation2 + $0x69] sm:$0xff]
        %v365 = vld [vmem:[#allocation2 + $0x79] sm:$0xff]
        %v366 = vld [vmem:[#allocation2 + $0x81] sm:$0xff]
        %v367 = vld [vmem:[#allocation2 + $0x91] sm:$0xff]
        %v368 = vld [vmem:[#allocation2 + $0x99] sm:$0xff]
        %v369 = vld [vmem:[#allocation2 + $0xa9] sm:$0xff]
        %v370 = vld [vmem:[#allocation2 + $0xb1] sm:$0xff]
        %v371 = vld [vmem:[#allocation2 + $0xc1] sm:$0xff]
        %v372 = vld [vmem:[#allocation2 + $0xc9] sm:$0xff]
        %v373 = vld [vmem:[#allocation2 + $0xd9] sm:$0xff]
        %v374 = vld [vmem:[#allocation2 + $0xe1] sm:$0xff]
        %v375 = vld [vmem:[#allocation2 + $0xf1] sm:$0xff]
        %v376 = vld [vmem:[#allocation2 + $0xf9] sm:$0xff]
        %v377 = vld [vmem:[#allocation2 + $0x109] sm:$0xff]
        %v378 = vld [vmem:[#allocation2 + $0x111] sm:$0xff]
        %v379 = vld [vmem:[#allocation2 + $0x121] sm:$0xff]
        %v380 = vld [vmem:[#allocation2 + $0x129] sm:$0xff]
        %v381 = vld [vmem:[#allocation2 + $0x139] sm:$0xff]
        %v382 = vld [vmem:[#allocation2 + $0x141] sm:$0xff]
        %v383 = vld [vmem:[#allocation2 + $0x151] sm:$0xff]
        %v384 = vld [vmem:[#allocation2 + $0x159] sm:$0xff]
        %v385 = vld [vmem:[#allocation2 + $0x169] sm:$0xff]
        %v386 = vld [vmem:[#allocation2 + $0x171] sm:$0xff]
        %v387 = vld [vmem:[#allocation2 + $0x2] sm:$0xff]
        %v388 = vld [vmem:[#allocation2 + $0xa] sm:$0xff]
        %v389 = vld [vmem:[#allocation2 + $0x1a] sm:$0xff]
        %v390 = vld [vmem:[#allocation2 + $0x22] sm:$0xff]
        %v391 = vld [vmem:[#allocation2 + $0x32] sm:$0xff]
        %v392 = vld [vmem:[#allocation2 + $0x3a] sm:$0xff]
        %v393 = vld [vmem:[#allocation2 + $0x4a] sm:$0xff]
        %v394 = vld [vmem:[#allocation2 + $0x52] sm:$0xff]
        %v395 = vld [vmem:[#allocation2 + $0x62] sm:$0xff]
        %v396 = vld [vmem:[#allocation2 + $0x6a] sm:$0xff]
        %v397 = vld [vmem:[#allocation2 + $0x7a] sm:$0xff]
        %v398 = vld [vmem:[#allocation2 + $0x82] sm:$0xff]
        %v399 = vld [vmem:[#allocation2 + $0x92] sm:$0xff]
        %v400 = vld [vmem:[#allocation2 + $0x9a] sm:$0xff]
        %v401 = vld [vmem:[#allocation2 + $0xaa] sm:$0xff]
        %v402 = vld [vmem:[#allocation2 + $0xb2] sm:$0xff]
        %v403 = vld [vmem:[#allocation2 + $0xc2] sm:$0xff]
        %v404 = vld [vmem:[#allocation2 + $0xca] sm:$0xff]
        %v405 = vld [vmem:[#allocation2 + $0xda] sm:$0xff]
        %v406 = vld [vmem:[#allocation2 + $0xe2] sm:$0xff]
        %v407 = vld [vmem:[#allocation2 + $0xf2] sm:$0xff]
        %v408 = vld [vmem:[#allocation2 + $0xfa] sm:$0xff]
        %v409 = vld [vmem:[#allocation2 + $0x10a] sm:$0xff]
        %v410 = vld [vmem:[#allocation2 + $0x112] sm:$0xff]
        %v411 = vld [vmem:[#allocation2 + $0x122] sm:$0xff]
        %v412 = vld [vmem:[#allocation2 + $0x12a] sm:$0xff]
        %v413 = vld [vmem:[#allocation2 + $0x13a] sm:$0xff]
        %v414 = vld [vmem:[#allocation2 + $0x142] sm:$0xff]
        %v415 = vld [vmem:[#allocation2 + $0x152] sm:$0xff]
        %v416 = vld [vmem:[#allocation2 + $0x15a] sm:$0xff]
        %v417 = vld [vmem:[#allocation2 + $0x16a] sm:$0xff]
        %v418 = vld [vmem:[#allocation2 + $0x172] sm:$0xff]
        %v419 = vld [vmem:[%s290] sm:$0xff]
        %v420 = vld [vmem:[%s290 + $0x8] sm:$0xff]
        %v421 = vld [vmem:[%s290 + $0x18] sm:$0xff]
        %v422 = vld [vmem:[%s290 + $0x20] sm:$0xff]
        %v423 = vld [vmem:[%s290 + $0x30] sm:$0xff]
        %v424 = vld [vmem:[%s290 + $0x38] sm:$0xff]
        %v425 = vld [vmem:[%s290 + $0x48] sm:$0xff]
        %v426 = vld [vmem:[%s290 + $0x50] sm:$0xff]
        %v427 = vld [vmem:[%s290 + $0x60] sm:$0xff]
        %v428 = vld [vmem:[%s290 + $0x68] sm:$0xff]
        %v429 = vld [vmem:[%s290 + $0x78] sm:$0xff]
        %v430 = vld [vmem:[%s290 + $0x80] sm:$0xff]
        %v431 = vld [vmem:[%s290 + $0x90] sm:$0xff]
        %v432 = vld [vmem:[%s290 + $0x98] sm:$0xff]
        %v433 = vld [vmem:[%s290 + $0xa8] sm:$0xff]
        %v434 = vld [vmem:[%s290 + $0xb0] sm:$0xff]
        %v435 = vld [vmem:[%s290 + $0xc0] sm:$0xff]
        %v436 = vld [vmem:[%s290 + $0xc8] sm:$0xff]
        %v437 = vld [vmem:[%s290 + $0xd8] sm:$0xff]
        %v438 = vld [vmem:[%s290 + $0xe0] sm:$0xff]
        %v439 = vld [vmem:[%s290 + $0xf0] sm:$0xff]
        %v440 = vld [vmem:[%s290 + $0xf8] sm:$0xff]
        %v441 = vld [vmem:[%s290 + $0x108] sm:$0xff]
        %v442 = vld [vmem:[%s290 + $0x110] sm:$0xff]
        %v443 = vld [vmem:[%s290 + $0x120] sm:$0xff]
        %v444 = vld [vmem:[%s290 + $0x128] sm:$0xff]
        %v445 = vld [vmem:[%s290 + $0x138] sm:$0xff]
        %v446 = vld [vmem:[%s290 + $0x140] sm:$0xff]
        %v447 = vld [vmem:[%s290 + $0x150] sm:$0xff]
        %v448 = vld [vmem:[%s290 + $0x158] sm:$0xff]
        %v449 = vld [vmem:[%s290 + $0x168] sm:$0xff]
        %v450 = vld [vmem:[%s290 + $0x170] sm:$0xff]
        %v451 = vld [vmem:[%s290 + $0x1] sm:$0xff]
        %v452 = vld [vmem:[%s290 + $0x9] sm:$0xff]
        %v453 = vld [vmem:[%s290 + $0x19] sm:$0xff]
        %v454 = vld [vmem:[%s290 + $0x21] sm:$0xff]
        %v455 = vld [vmem:[%s290 + $0x31] sm:$0xff]
        %v456 = vld [vmem:[%s290 + $0x39] sm:$0xff]
        %v457 = vld [vmem:[%s290 + $0x49] sm:$0xff]
        %v458 = vld [vmem:[%s290 + $0x51] sm:$0xff]
        %v459 = vld [vmem:[%s290 + $0x61] sm:$0xff]
        %v460 = vld [vmem:[%s290 + $0x69] sm:$0xff]
        %v461 = vld [vmem:[%s290 + $0x79] sm:$0xff]
        %v462 = vld [vmem:[%s290 + $0x81] sm:$0xff]
        %v463 = vld [vmem:[%s290 + $0x91] sm:$0xff]
        %v464 = vld [vmem:[%s290 + $0x99] sm:$0xff]
        %v465 = vld [vmem:[%s290 + $0xa9] sm:$0xff]
        %v466 = vld [vmem:[%s290 + $0xb1] sm:$0xff]
        %v467 = vld [vmem:[%s290 + $0xc1] sm:$0xff]
        %v468 = vld [vmem:[%s290 + $0xc9] sm:$0xff]
        %v469 = vld [vmem:[%s290 + $0xd9] sm:$0xff]
        %v470 = vld [vmem:[%s290 + $0xe1] sm:$0xff]
        %v471 = vld [vmem:[%s290 + $0xf1] sm:$0xff]
        %v472 = vld [vmem:[%s290 + $0xf9] sm:$0xff]
        %v473 = vld [vmem:[%s290 + $0x109] sm:$0xff]
        %v474 = vld [vmem:[%s290 + $0x111] sm:$0xff]
        %v475 = vld [vmem:[%s290 + $0x121] sm:$0xff]
        %v476 = vld [vmem:[%s290 + $0x129] sm:$0xff]
        %v477 = vld [vmem:[%s290 + $0x139] sm:$0xff]
        %v478 = vld [vmem:[%s290 + $0x141] sm:$0xff]
        %v479 = vld [vmem:[%s290 + $0x151] sm:$0xff]
        %v480 = vld [vmem:[%s290 + $0x159] sm:$0xff]
        %v481 = vld [vmem:[%s290 + $0x169] sm:$0xff]
        %v482 = vld [vmem:[%s290 + $0x171] sm:$0xff]
        %v483 = vld [vmem:[%s290 + $0x2] sm:$0xff]
        %v484 = vld [vmem:[%s290 + $0xa] sm:$0xff]
        %v485 = vld [vmem:[%s290 + $0x1a] sm:$0xff]
        %v486 = vld [vmem:[%s290 + $0x22] sm:$0xff]
        %v487 = vld [vmem:[%s290 + $0x32] sm:$0xff]
        %v488 = vld [vmem:[%s290 + $0x3a] sm:$0xff]
        %v489 = vld [vmem:[%s290 + $0x4a] sm:$0xff]
        %v490 = vld [vmem:[%s290 + $0x52] sm:$0xff]
        %v491 = vld [vmem:[%s290 + $0x62] sm:$0xff]
        %v492 = vld [vmem:[%s290 + $0x6a] sm:$0xff]
        %v493 = vld [vmem:[%s290 + $0x7a] sm:$0xff]
        %v494 = vld [vmem:[%s290 + $0x82] sm:$0xff]
        %v495 = vld [vmem:[%s290 + $0x92] sm:$0xff]
        %v496 = vld [vmem:[%s290 + $0x9a] sm:$0xff]
        %v497 = vld [vmem:[%s290 + $0xaa] sm:$0xff]
        %v498 = vld [vmem:[%s290 + $0xb2] sm:$0xff]
        %v499 = vld [vmem:[%s290 + $0xc2] sm:$0xff]
        %v500 = vld [vmem:[%s290 + $0xca] sm:$0xff]
        %v501 = vld [vmem:[%s290 + $0xda] sm:$0xff]
        %v502 = vld [vmem:[%s290 + $0xe2] sm:$0xff]
        %v503 = vld [vmem:[%s290 + $0xf2] sm:$0xff]
        %v504 = vld [vmem:[%s290 + $0xfa] sm:$0xff]
        %v505 = vld [vmem:[%s290 + $0x10a] sm:$0xff]
        %v506 = vld [vmem:[%s290 + $0x112] sm:$0xff]
        %v507 = vld [vmem:[%s290 + $0x122] sm:$0xff]
        %v508 = vld [vmem:[%s290 + $0x12a] sm:$0xff]
        %v509 = vld [vmem:[%s290 + $0x13a] sm:$0xff]
        %v510 = vld [vmem:[%s290 + $0x142] sm:$0xff]
        %v511 = vld [vmem:[%s290 + $0x152] sm:$0xff]
        %v512 = vld [vmem:[%s290 + $0x15a] sm:$0xff]
        %v513 = vld [vmem:[%s290 + $0x16a] sm:$0xff]
        %v514 = vld [vmem:[%s290 + $0x172] sm:$0xff]
        %s515 = scalar_lea.vmem [#allocation2], 48
        %v516 = vld [vmem:[%s515] sm:$0xff]
        %v517 = vld [vmem:[%s515 + $0x8] sm:$0xff]
        %v518 = vld [vmem:[%s515 + $0x18] sm:$0xff]
        %v519 = vld [vmem:[%s515 + $0x20] sm:$0xff]
        %v520 = vld [vmem:[%s515 + $0x30] sm:$0xff]
        %v521 = vld [vmem:[%s515 + $0x38] sm:$0xff]
        %v522 = vld [vmem:[%s515 + $0x48] sm:$0xff]
        %v523 = vld [vmem:[%s515 + $0x50] sm:$0xff]
        %v524 = vld [vmem:[%s515 + $0x60] sm:$0xff]
        %v525 = vld [vmem:[%s515 + $0x68] sm:$0xff]
        %v526 = vld [vmem:[%s515 + $0x78] sm:$0xff]
        %v527 = vld [vmem:[%s515 + $0x80] sm:$0xff]
        %v528 = vld [vmem:[%s515 + $0x90] sm:$0xff]
        %v529 = vld [vmem:[%s515 + $0x98] sm:$0xff]
        %v530 = vld [vmem:[%s515 + $0xa8] sm:$0xff]
        %v531 = vld [vmem:[%s515 + $0xb0] sm:$0xff]
        %v532 = vld [vmem:[%s515 + $0xc0] sm:$0xff]
        %v533 = vld [vmem:[%s515 + $0xc8] sm:$0xff]
        %v534 = vld [vmem:[%s515 + $0xd8] sm:$0xff]
        %v535 = vld [vmem:[%s515 + $0xe0] sm:$0xff]
        %v536 = vld [vmem:[%s515 + $0xf0] sm:$0xff]
        %v537 = vld [vmem:[%s515 + $0xf8] sm:$0xff]
        %v538 = vld [vmem:[%s515 + $0x108] sm:$0xff]
        %v539 = vld [vmem:[%s515 + $0x110] sm:$0xff]
        %v540 = vld [vmem:[%s515 + $0x120] sm:$0xff]
        %v541 = vld [vmem:[%s515 + $0x128] sm:$0xff]
        %v542 = vld [vmem:[%s515 + $0x138] sm:$0xff]
        %v543 = vld [vmem:[%s515 + $0x140] sm:$0xff]
        %v544 = vld [vmem:[%s515 + $0x150] sm:$0xff]
        %v545 = vld [vmem:[%s515 + $0x158] sm:$0xff]
        %v546 = vld [vmem:[%s515 + $0x168] sm:$0xff]
        %v547 = vld [vmem:[%s515 + $0x170] sm:$0xff]
        %v548 = vld [vmem:[%s515 + $0x1] sm:$0xff]
        %v549 = vld [vmem:[%s515 + $0x9] sm:$0xff]
        %v550 = vld [vmem:[%s515 + $0x19] sm:$0xff]
        %v551 = vld [vmem:[%s515 + $0x21] sm:$0xff]
        %v552 = vld [vmem:[%s515 + $0x31] sm:$0xff]
        %v553 = vld [vmem:[%s515 + $0x39] sm:$0xff]
        %v554 = vld [vmem:[%s515 + $0x49] sm:$0xff]
        %v555 = vld [vmem:[%s515 + $0x51] sm:$0xff]
        %v556 = vld [vmem:[%s515 + $0x61] sm:$0xff]
        %v557 = vld [vmem:[%s515 + $0x69] sm:$0xff]
        %v558 = vld [vmem:[%s515 + $0x79] sm:$0xff]
        %v559 = vld [vmem:[%s515 + $0x81] sm:$0xff]
        %v560 = vld [vmem:[%s515 + $0x91] sm:$0xff]
        %v561 = vld [vmem:[%s515 + $0x99] sm:$0xff]
        %v562 = vld [vmem:[%s515 + $0xa9] sm:$0xff]
        %v563 = vld [vmem:[%s515 + $0xb1] sm:$0xff]
        %v564 = vld [vmem:[%s515 + $0xc1] sm:$0xff]
        %v565 = vld [vmem:[%s515 + $0xc9] sm:$0xff]
        %v566 = vld [vmem:[%s515 + $0xd9] sm:$0xff]
        %v567 = vld [vmem:[%s515 + $0xe1] sm:$0xff]
        %v568 = vld [vmem:[%s515 + $0xf1] sm:$0xff]
        %v569 = vld [vmem:[%s515 + $0xf9] sm:$0xff]
        %v570 = vld [vmem:[%s515 + $0x109] sm:$0xff]
        %v571 = vld [vmem:[%s515 + $0x111] sm:$0xff]
        %v572 = vld [vmem:[%s515 + $0x121] sm:$0xff]
        %v573 = vld [vmem:[%s515 + $0x129] sm:$0xff]
        %v574 = vld [vmem:[%s515 + $0x139] sm:$0xff]
        %v575 = vld [vmem:[%s515 + $0x141] sm:$0xff]
        %v576 = vld [vmem:[%s515 + $0x151] sm:$0xff]
        %v577 = vld [vmem:[%s515 + $0x159] sm:$0xff]
        %v578 = vld [vmem:[%s515 + $0x169] sm:$0xff]
        %v579 = vld [vmem:[%s515 + $0x171] sm:$0xff]
        %v580 = vld [vmem:[%s515 + $0x2] sm:$0xff]
        %v581 = vld [vmem:[%s515 + $0xa] sm:$0xff]
        %v582 = vld [vmem:[%s515 + $0x1a] sm:$0xff]
        %v583 = vld [vmem:[%s515 + $0x22] sm:$0xff]
        %v584 = vld [vmem:[%s515 + $0x32] sm:$0xff]
        %v585 = vld [vmem:[%s515 + $0x3a] sm:$0xff]
        %v586 = vld [vmem:[%s515 + $0x4a] sm:$0xff]
        %v587 = vld [vmem:[%s515 + $0x52] sm:$0xff]
        %v588 = vld [vmem:[%s515 + $0x62] sm:$0xff]
        %v589 = vld [vmem:[%s515 + $0x6a] sm:$0xff]
        %v590 = vld [vmem:[%s515 + $0x7a] sm:$0xff]
        %v591 = vld [vmem:[%s515 + $0x82] sm:$0xff]
        %v592 = vld [vmem:[%s515 + $0x92] sm:$0xff]
        %v593 = vld [vmem:[%s515 + $0x9a] sm:$0xff]
        %v594 = vld [vmem:[%s515 + $0xaa] sm:$0xff]
        %v595 = vld [vmem:[%s515 + $0xb2] sm:$0xff]
        %v596 = vld [vmem:[%s515 + $0xc2] sm:$0xff]
        %v597 = vld [vmem:[%s515 + $0xca] sm:$0xff]
        %v598 = vld [vmem:[%s515 + $0xda] sm:$0xff]
        %v599 = vld [vmem:[%s515 + $0xe2] sm:$0xff]
        %v600 = vld [vmem:[%s515 + $0xf2] sm:$0xff]
        %v601 = vld [vmem:[%s515 + $0xfa] sm:$0xff]
        %v602 = vld [vmem:[%s515 + $0x10a] sm:$0xff]
        %v603 = vld [vmem:[%s515 + $0x112] sm:$0xff]
        %v604 = vld [vmem:[%s515 + $0x122] sm:$0xff]
        %v605 = vld [vmem:[%s515 + $0x12a] sm:$0xff]
        %v606 = vld [vmem:[%s515 + $0x13a] sm:$0xff]
        %v607 = vld [vmem:[%s515 + $0x142] sm:$0xff]
        %v608 = vld [vmem:[%s515 + $0x152] sm:$0xff]
        %v609 = vld [vmem:[%s515 + $0x15a] sm:$0xff]
        %v610 = vld [vmem:[%s515 + $0x16a] sm:$0xff]
        %v611 = vld [vmem:[%s515 + $0x172] sm:$0xff]
        %644 = vrot.lane.b32.xlu0 %v355, 3
        %v645 = vpop.permute.xlu0 %644
        %646 = vrot.lane.b32.xlu0 %v356, 3
        %v647 = vpop.permute.xlu0 %646
        %648 = vrot.lane.b32.xlu0 %v357, 3
        %v649 = vpop.permute.xlu0 %648
        %650 = vrot.lane.b32.xlu0 %v358, 3
        %v651 = vpop.permute.xlu0 %650
        %652 = vrot.lane.b32.xlu0 %v359, 3
        %v653 = vpop.permute.xlu0 %652
        %654 = vrot.lane.b32.xlu0 %v360, 3
        %v655 = vpop.permute.xlu0 %654
        %656 = vrot.lane.b32.xlu0 %v361, 3
        %v657 = vpop.permute.xlu0 %656
        %658 = vrot.lane.b32.xlu0 %v362, 3
        %v659 = vpop.permute.xlu0 %658
        %660 = vrot.lane.b32.xlu0 %v363, 3
        %v661 = vpop.permute.xlu0 %660
        %662 = vrot.lane.b32.xlu0 %v364, 3
        %v663 = vpop.permute.xlu0 %662
        %664 = vrot.lane.b32.xlu0 %v365, 3
        %v665 = vpop.permute.xlu0 %664
        %666 = vrot.lane.b32.xlu0 %v366, 3
        %v667 = vpop.permute.xlu0 %666
        %668 = vrot.lane.b32.xlu0 %v367, 3
        %v669 = vpop.permute.xlu0 %668
        %670 = vrot.lane.b32.xlu0 %v368, 3
        %v671 = vpop.permute.xlu0 %670
        %672 = vrot.lane.b32.xlu0 %v369, 3
        %v673 = vpop.permute.xlu0 %672
        %674 = vrot.lane.b32.xlu0 %v370, 3
        %v675 = vpop.permute.xlu0 %674
        %676 = vrot.lane.b32.xlu0 %v371, 3
        %v677 = vpop.permute.xlu0 %676
        %678 = vrot.lane.b32.xlu0 %v372, 3
        %v679 = vpop.permute.xlu0 %678
        %680 = vrot.lane.b32.xlu0 %v373, 3
        %v681 = vpop.permute.xlu0 %680
        %682 = vrot.lane.b32.xlu0 %v374, 3
        %v683 = vpop.permute.xlu0 %682
        %684 = vrot.lane.b32.xlu0 %v375, 3
        %v685 = vpop.permute.xlu0 %684
        %686 = vrot.lane.b32.xlu0 %v376, 3
        %v687 = vpop.permute.xlu0 %686
        %688 = vrot.lane.b32.xlu0 %v377, 3
        %v689 = vpop.permute.xlu0 %688
        %690 = vrot.lane.b32.xlu0 %v378, 3
        %v691 = vpop.permute.xlu0 %690
        %692 = vrot.lane.b32.xlu0 %v379, 3
        %v693 = vpop.permute.xlu0 %692
        %694 = vrot.lane.b32.xlu0 %v380, 3
        %v695 = vpop.permute.xlu0 %694
        %696 = vrot.lane.b32.xlu0 %v381, 3
        %v697 = vpop.permute.xlu0 %696
        %698 = vrot.lane.b32.xlu0 %v382, 3
        %v699 = vpop.permute.xlu0 %698
        %700 = vrot.lane.b32.xlu0 %v383, 3
        %v701 = vpop.permute.xlu0 %700
        %702 = vrot.lane.b32.xlu0 %v384, 3
        %v703 = vpop.permute.xlu0 %702
        %704 = vrot.lane.b32.xlu0 %v385, 3
        %v705 = vpop.permute.xlu0 %704
        %706 = vrot.lane.b32.xlu0 %v386, 3
        %v707 = vpop.permute.xlu0 %706
        %772 = vrot.lane.b32.xlu0 %v387, 6
        %v773 = vpop.permute.xlu0 %772
        %774 = vrot.lane.b32.xlu0 %v388, 6
        %v775 = vpop.permute.xlu0 %774
        %776 = vrot.lane.b32.xlu0 %v389, 6
        %v777 = vpop.permute.xlu0 %776
        %778 = vrot.lane.b32.xlu0 %v390, 6
        %v779 = vpop.permute.xlu0 %778
        %780 = vrot.lane.b32.xlu0 %v391, 6
        %v781 = vpop.permute.xlu0 %780
        %782 = vrot.lane.b32.xlu0 %v392, 6
        %v783 = vpop.permute.xlu0 %782
        %784 = vrot.lane.b32.xlu0 %v393, 6
        %v785 = vpop.permute.xlu0 %784
        %786 = vrot.lane.b32.xlu0 %v394, 6
        %v787 = vpop.permute.xlu0 %786
        %788 = vrot.lane.b32.xlu0 %v395, 6
        %v789 = vpop.permute.xlu0 %788
        %790 = vrot.lane.b32.xlu0 %v396, 6
        %v791 = vpop.permute.xlu0 %790
        %792 = vrot.lane.b32.xlu0 %v397, 6
        %v793 = vpop.permute.xlu0 %792
        %794 = vrot.lane.b32.xlu0 %v398, 6
        %v795 = vpop.permute.xlu0 %794
        %796 = vrot.lane.b32.xlu0 %v399, 6
        %v797 = vpop.permute.xlu0 %796
        %798 = vrot.lane.b32.xlu0 %v400, 6
        %v799 = vpop.permute.xlu0 %798
        %800 = vrot.lane.b32.xlu0 %v401, 6
        %v801 = vpop.permute.xlu0 %800
        %802 = vrot.lane.b32.xlu0 %v402, 6
        %v803 = vpop.permute.xlu0 %802
        %804 = vrot.lane.b32.xlu0 %v403, 6
        %v805 = vpop.permute.xlu0 %804
        %806 = vrot.lane.b32.xlu0 %v404, 6
        %v807 = vpop.permute.xlu0 %806
        %808 = vrot.lane.b32.xlu0 %v405, 6
        %v809 = vpop.permute.xlu0 %808
        %810 = vrot.lane.b32.xlu0 %v406, 6
        %v811 = vpop.permute.xlu0 %810
        %812 = vrot.lane.b32.xlu0 %v407, 6
        %v813 = vpop.permute.xlu0 %812
        %814 = vrot.lane.b32.xlu0 %v408, 6
        %v815 = vpop.permute.xlu0 %814
        %816 = vrot.lane.b32.xlu0 %v409, 6
        %v817 = vpop.permute.xlu0 %816
        %818 = vrot.lane.b32.xlu0 %v410, 6
        %v819 = vpop.permute.xlu0 %818
        %820 = vrot.lane.b32.xlu0 %v411, 6
        %v821 = vpop.permute.xlu0 %820
        %822 = vrot.lane.b32.xlu0 %v412, 6
        %v823 = vpop.permute.xlu0 %822
        %824 = vrot.lane.b32.xlu0 %v413, 6
        %v825 = vpop.permute.xlu0 %824
        %826 = vrot.lane.b32.xlu0 %v414, 6
        %v827 = vpop.permute.xlu0 %826
        %828 = vrot.lane.b32.xlu0 %v415, 6
        %v829 = vpop.permute.xlu0 %828
        %830 = vrot.lane.b32.xlu0 %v416, 6
        %v831 = vpop.permute.xlu0 %830
        %832 = vrot.lane.b32.xlu0 %v417, 6
        %v833 = vpop.permute.xlu0 %832
        %834 = vrot.lane.b32.xlu0 %v418, 6
        %v835 = vpop.permute.xlu0 %834
        %900 = vrot.lane.b32.xlu0 %v419, 9
        %v901 = vpop.permute.xlu0 %900
        %902 = vrot.lane.b32.xlu0 %v420, 9
        %v903 = vpop.permute.xlu0 %902
        %904 = vrot.lane.b32.xlu0 %v421, 9
        %v905 = vpop.permute.xlu0 %904
        %906 = vrot.lane.b32.xlu0 %v422, 9
        %v907 = vpop.permute.xlu0 %906
        %908 = vrot.lane.b32.xlu0 %v423, 9
        %v909 = vpop.permute.xlu0 %908
        %910 = vrot.lane.b32.xlu0 %v424, 9
        %v911 = vpop.permute.xlu0 %910
        %912 = vrot.lane.b32.xlu0 %v425, 9
        %v913 = vpop.permute.xlu0 %912
        %914 = vrot.lane.b32.xlu0 %v426, 9
        %v915 = vpop.permute.xlu0 %914
        %916 = vrot.lane.b32.xlu0 %v427, 9
        %v917 = vpop.permute.xlu0 %916
        %918 = vrot.lane.b32.xlu0 %v428, 9
        %v919 = vpop.permute.xlu0 %918
        %920 = vrot.lane.b32.xlu0 %v429, 9
        %v921 = vpop.permute.xlu0 %920
        %922 = vrot.lane.b32.xlu0 %v430, 9
        %v923 = vpop.permute.xlu0 %922
        %924 = vrot.lane.b32.xlu0 %v431, 9
        %v925 = vpop.permute.xlu0 %924
        %926 = vrot.lane.b32.xlu0 %v432, 9
        %v927 = vpop.permute.xlu0 %926
        %928 = vrot.lane.b32.xlu0 %v433, 9
        %v929 = vpop.permute.xlu0 %928
        %930 = vrot.lane.b32.xlu0 %v434, 9
        %v931 = vpop.permute.xlu0 %930
        %932 = vrot.lane.b32.xlu0 %v435, 9
        %v933 = vpop.permute.xlu0 %932
        %934 = vrot.lane.b32.xlu0 %v436, 9
        %v935 = vpop.permute.xlu0 %934
        %936 = vrot.lane.b32.xlu0 %v437, 9
        %v937 = vpop.permute.xlu0 %936
        %938 = vrot.lane.b32.xlu0 %v438, 9
        %v939 = vpop.permute.xlu0 %938
        %940 = vrot.lane.b32.xlu0 %v439, 9
        %v941 = vpop.permute.xlu0 %940
        %942 = vrot.lane.b32.xlu0 %v440, 9
        %v943 = vpop.permute.xlu0 %942
        %944 = vrot.lane.b32.xlu0 %v441, 9
        %v945 = vpop.permute.xlu0 %944
        %946 = vrot.lane.b32.xlu0 %v442, 9
        %v947 = vpop.permute.xlu0 %946
        %948 = vrot.lane.b32.xlu0 %v443, 9
        %v949 = vpop.permute.xlu0 %948
        %950 = vrot.lane.b32.xlu0 %v444, 9
        %v951 = vpop.permute.xlu0 %950
        %952 = vrot.lane.b32.xlu0 %v445, 9
        %v953 = vpop.permute.xlu0 %952
        %954 = vrot.lane.b32.xlu0 %v446, 9
        %v955 = vpop.permute.xlu0 %954
        %956 = vrot.lane.b32.xlu0 %v447, 9
        %v957 = vpop.permute.xlu0 %956
        %958 = vrot.lane.b32.xlu0 %v448, 9
        %v959 = vpop.permute.xlu0 %958
        %960 = vrot.lane.b32.xlu0 %v449, 9
        %v961 = vpop.permute.xlu0 %960
        %962 = vrot.lane.b32.xlu0 %v450, 9
        %v963 = vpop.permute.xlu0 %962
        %1028 = vrot.lane.b32.xlu0 %v451, 12
        %v1029 = vpop.permute.xlu0 %1028
        %1030 = vrot.lane.b32.xlu0 %v452, 12
        %v1031 = vpop.permute.xlu0 %1030
        %1032 = vrot.lane.b32.xlu0 %v453, 12
        %v1033 = vpop.permute.xlu0 %1032
        %1034 = vrot.lane.b32.xlu0 %v454, 12
        %v1035 = vpop.permute.xlu0 %1034
        %1036 = vrot.lane.b32.xlu0 %v455, 12
        %v1037 = vpop.permute.xlu0 %1036
        %1038 = vrot.lane.b32.xlu0 %v456, 12
        %v1039 = vpop.permute.xlu0 %1038
        %1040 = vrot.lane.b32.xlu0 %v457, 12
        %v1041 = vpop.permute.xlu0 %1040
        %1042 = vrot.lane.b32.xlu0 %v458, 12
        %v1043 = vpop.permute.xlu0 %1042
        %1044 = vrot.lane.b32.xlu0 %v459, 12
        %v1045 = vpop.permute.xlu0 %1044
        %1046 = vrot.lane.b32.xlu0 %v460, 12
        %v1047 = vpop.permute.xlu0 %1046
        %1048 = vrot.lane.b32.xlu0 %v461, 12
        %v1049 = vpop.permute.xlu0 %1048
        %1050 = vrot.lane.b32.xlu0 %v462, 12
        %v1051 = vpop.permute.xlu0 %1050
        %1052 = vrot.lane.b32.xlu0 %v463, 12
        %v1053 = vpop.permute.xlu0 %1052
        %1054 = vrot.lane.b32.xlu0 %v464, 12
        %v1055 = vpop.permute.xlu0 %1054
        %1056 = vrot.lane.b32.xlu0 %v465, 12
        %v1057 = vpop.permute.xlu0 %1056
        %1058 = vrot.lane.b32.xlu0 %v466, 12
        %v1059 = vpop.permute.xlu0 %1058
        %1060 = vrot.lane.b32.xlu0 %v467, 12
        %v1061 = vpop.permute.xlu0 %1060
        %1062 = vrot.lane.b32.xlu0 %v468, 12
        %v1063 = vpop.permute.xlu0 %1062
        %1064 = vrot.lane.b32.xlu0 %v469, 12
        %v1065 = vpop.permute.xlu0 %1064
        %1066 = vrot.lane.b32.xlu0 %v470, 12
        %v1067 = vpop.permute.xlu0 %1066
        %1068 = vrot.lane.b32.xlu0 %v471, 12
        %v1069 = vpop.permute.xlu0 %1068
        %1070 = vrot.lane.b32.xlu0 %v472, 12
        %v1071 = vpop.permute.xlu0 %1070
        %1072 = vrot.lane.b32.xlu0 %v473, 12
        %v1073 = vpop.permute.xlu0 %1072
        %1074 = vrot.lane.b32.xlu0 %v474, 12
        %v1075 = vpop.permute.xlu0 %1074
        %1076 = vrot.lane.b32.xlu0 %v475, 12
        %v1077 = vpop.permute.xlu0 %1076
        %1078 = vrot.lane.b32.xlu0 %v476, 12
        %v1079 = vpop.permute.xlu0 %1078
        %1080 = vrot.lane.b32.xlu0 %v477, 12
        %v1081 = vpop.permute.xlu0 %1080
        %1082 = vrot.lane.b32.xlu0 %v478, 12
        %v1083 = vpop.permute.xlu0 %1082
        %1084 = vrot.lane.b32.xlu0 %v479, 12
        %v1085 = vpop.permute.xlu0 %1084
        %1086 = vrot.lane.b32.xlu0 %v480, 12
        %v1087 = vpop.permute.xlu0 %1086
        %1088 = vrot.lane.b32.xlu0 %v481, 12
        %v1089 = vpop.permute.xlu0 %1088
        %1090 = vrot.lane.b32.xlu0 %v482, 12
        %v1091 = vpop.permute.xlu0 %1090
        %1156 = vrot.lane.b32.xlu0 %v483, 15
        %v1157 = vpop.permute.xlu0 %1156
        %1158 = vrot.lane.b32.xlu0 %v484, 15
        %v1159 = vpop.permute.xlu0 %1158
        %1160 = vrot.lane.b32.xlu0 %v485, 15
        %v1161 = vpop.permute.xlu0 %1160
        %1162 = vrot.lane.b32.xlu0 %v486, 15
        %v1163 = vpop.permute.xlu0 %1162
        %1164 = vrot.lane.b32.xlu0 %v487, 15
        %v1165 = vpop.permute.xlu0 %1164
        %1166 = vrot.lane.b32.xlu0 %v488, 15
        %v1167 = vpop.permute.xlu0 %1166
        %1168 = vrot.lane.b32.xlu0 %v489, 15
        %v1169 = vpop.permute.xlu0 %1168
        %1170 = vrot.lane.b32.xlu0 %v490, 15
        %v1171 = vpop.permute.xlu0 %1170
        %1172 = vrot.lane.b32.xlu0 %v491, 15
        %v1173 = vpop.permute.xlu0 %1172
        %1174 = vrot.lane.b32.xlu0 %v492, 15
        %v1175 = vpop.permute.xlu0 %1174
        %1176 = vrot.lane.b32.xlu0 %v493, 15
        %v1177 = vpop.permute.xlu0 %1176
        %1178 = vrot.lane.b32.xlu0 %v494, 15
        %v1179 = vpop.permute.xlu0 %1178
        %1180 = vrot.lane.b32.xlu0 %v495, 15
        %v1181 = vpop.permute.xlu0 %1180
        %1182 = vrot.lane.b32.xlu0 %v496, 15
        %v1183 = vpop.permute.xlu0 %1182
        %1184 = vrot.lane.b32.xlu0 %v497, 15
        %v1185 = vpop.permute.xlu0 %1184
        %1186 = vrot.lane.b32.xlu0 %v498, 15
        %v1187 = vpop.permute.xlu0 %1186
        %1188 = vrot.lane.b32.xlu0 %v499, 15
        %v1189 = vpop.permute.xlu0 %1188
        %1190 = vrot.lane.b32.xlu0 %v500, 15
        %v1191 = vpop.permute.xlu0 %1190
        %1192 = vrot.lane.b32.xlu0 %v501, 15
        %v1193 = vpop.permute.xlu0 %1192
        %1194 = vrot.lane.b32.xlu0 %v502, 15
        %v1195 = vpop.permute.xlu0 %1194
        %1196 = vrot.lane.b32.xlu0 %v503, 15
        %v1197 = vpop.permute.xlu0 %1196
        %1198 = vrot.lane.b32.xlu0 %v504, 15
        %v1199 = vpop.permute.xlu0 %1198
        %1200 = vrot.lane.b32.xlu0 %v505, 15
        %v1201 = vpop.permute.xlu0 %1200
        %1202 = vrot.lane.b32.xlu0 %v506, 15
        %v1203 = vpop.permute.xlu0 %1202
        %1204 = vrot.lane.b32.xlu0 %v507, 15
        %v1205 = vpop.permute.xlu0 %1204
        %1206 = vrot.lane.b32.xlu0 %v508, 15
        %v1207 = vpop.permute.xlu0 %1206
        %1208 = vrot.lane.b32.xlu0 %v509, 15
        %v1209 = vpop.permute.xlu0 %1208
        %1210 = vrot.lane.b32.xlu0 %v510, 15
        %v1211 = vpop.permute.xlu0 %1210
        %1212 = vrot.lane.b32.xlu0 %v511, 15
        %v1213 = vpop.permute.xlu0 %1212
        %1214 = vrot.lane.b32.xlu0 %v512, 15
        %v1215 = vpop.permute.xlu0 %1214
        %1216 = vrot.lane.b32.xlu0 %v513, 15
        %v1217 = vpop.permute.xlu0 %1216
        %1218 = vrot.lane.b32.xlu0 %v514, 15
        %v1219 = vpop.permute.xlu0 %1218
        %1284 = vrot.lane.b32.xlu0 %v516, 18
        %v1285 = vpop.permute.xlu0 %1284
        %1286 = vrot.lane.b32.xlu0 %v517, 18
        %v1287 = vpop.permute.xlu0 %1286
        %1288 = vrot.lane.b32.xlu0 %v518, 18
        %v1289 = vpop.permute.xlu0 %1288
        %1290 = vrot.lane.b32.xlu0 %v519, 18
        %v1291 = vpop.permute.xlu0 %1290
        %1292 = vrot.lane.b32.xlu0 %v520, 18
        %v1293 = vpop.permute.xlu0 %1292
        %1294 = vrot.lane.b32.xlu0 %v521, 18
        %v1295 = vpop.permute.xlu0 %1294
        %1296 = vrot.lane.b32.xlu0 %v522, 18
        %v1297 = vpop.permute.xlu0 %1296
        %1298 = vrot.lane.b32.xlu0 %v523, 18
        %v1299 = vpop.permute.xlu0 %1298
        %1300 = vrot.lane.b32.xlu0 %v524, 18
        %v1301 = vpop.permute.xlu0 %1300
        %1302 = vrot.lane.b32.xlu0 %v525, 18
        %v1303 = vpop.permute.xlu0 %1302
        %1304 = vrot.lane.b32.xlu0 %v526, 18
        %v1305 = vpop.permute.xlu0 %1304
        %1306 = vrot.lane.b32.xlu0 %v527, 18
        %v1307 = vpop.permute.xlu0 %1306
        %1308 = vrot.lane.b32.xlu0 %v528, 18
        %v1309 = vpop.permute.xlu0 %1308
        %1310 = vrot.lane.b32.xlu0 %v529, 18
        %v1311 = vpop.permute.xlu0 %1310
        %1312 = vrot.lane.b32.xlu0 %v530, 18
        %v1313 = vpop.permute.xlu0 %1312
        %1314 = vrot.lane.b32.xlu0 %v531, 18
        %v1315 = vpop.permute.xlu0 %1314
        %1316 = vrot.lane.b32.xlu0 %v532, 18
        %v1317 = vpop.permute.xlu0 %1316
        %1318 = vrot.lane.b32.xlu0 %v533, 18
        %v1319 = vpop.permute.xlu0 %1318
        %1320 = vrot.lane.b32.xlu0 %v534, 18
        %v1321 = vpop.permute.xlu0 %1320
        %1322 = vrot.lane.b32.xlu0 %v535, 18
        %v1323 = vpop.permute.xlu0 %1322
        %1324 = vrot.lane.b32.xlu0 %v536, 18
        %v1325 = vpop.permute.xlu0 %1324
        %1326 = vrot.lane.b32.xlu0 %v537, 18
        %v1327 = vpop.permute.xlu0 %1326
        %1328 = vrot.lane.b32.xlu0 %v538, 18
        %v1329 = vpop.permute.xlu0 %1328
        %1330 = vrot.lane.b32.xlu0 %v539, 18
        %v1331 = vpop.permute.xlu0 %1330
        %1332 = vrot.lane.b32.xlu0 %v540, 18
        %v1333 = vpop.permute.xlu0 %1332
        %1334 = vrot.lane.b32.xlu0 %v541, 18
        %v1335 = vpop.permute.xlu0 %1334
        %1336 = vrot.lane.b32.xlu0 %v542, 18
        %v1337 = vpop.permute.xlu0 %1336
        %1338 = vrot.lane.b32.xlu0 %v543, 18
        %v1339 = vpop.permute.xlu0 %1338
        %1340 = vrot.lane.b32.xlu0 %v544, 18
        %v1341 = vpop.permute.xlu0 %1340
        %1342 = vrot.lane.b32.xlu0 %v545, 18
        %v1343 = vpop.permute.xlu0 %1342
        %1344 = vrot.lane.b32.xlu0 %v546, 18
        %v1345 = vpop.permute.xlu0 %1344
        %1346 = vrot.lane.b32.xlu0 %v547, 18
        %v1347 = vpop.permute.xlu0 %1346
        %1412 = vrot.lane.b32.xlu0 %v548, 21
        %v1413 = vpop.permute.xlu0 %1412
        %1414 = vrot.lane.b32.xlu0 %v549, 21
        %v1415 = vpop.permute.xlu0 %1414
        %1416 = vrot.lane.b32.xlu0 %v550, 21
        %v1417 = vpop.permute.xlu0 %1416
        %1418 = vrot.lane.b32.xlu0 %v551, 21
        %v1419 = vpop.permute.xlu0 %1418
        %1420 = vrot.lane.b32.xlu0 %v552, 21
        %v1421 = vpop.permute.xlu0 %1420
        %1422 = vrot.lane.b32.xlu0 %v553, 21
        %v1423 = vpop.permute.xlu0 %1422
        %1424 = vrot.lane.b32.xlu0 %v554, 21
        %v1425 = vpop.permute.xlu0 %1424
        %1426 = vrot.lane.b32.xlu0 %v555, 21
        %v1427 = vpop.permute.xlu0 %1426
        %1428 = vrot.lane.b32.xlu0 %v556, 21
        %v1429 = vpop.permute.xlu0 %1428
        %1430 = vrot.lane.b32.xlu0 %v557, 21
        %v1431 = vpop.permute.xlu0 %1430
        %1432 = vrot.lane.b32.xlu0 %v558, 21
        %v1433 = vpop.permute.xlu0 %1432
        %1434 = vrot.lane.b32.xlu0 %v559, 21
        %v1435 = vpop.permute.xlu0 %1434
        %1436 = vrot.lane.b32.xlu0 %v560, 21
        %v1437 = vpop.permute.xlu0 %1436
        %1438 = vrot.lane.b32.xlu0 %v561, 21
        %v1439 = vpop.permute.xlu0 %1438
        %1440 = vrot.lane.b32.xlu0 %v562, 21
        %v1441 = vpop.permute.xlu0 %1440
        %1442 = vrot.lane.b32.xlu0 %v563, 21
        %v1443 = vpop.permute.xlu0 %1442
        %1444 = vrot.lane.b32.xlu0 %v564, 21
        %v1445 = vpop.permute.xlu0 %1444
        %1446 = vrot.lane.b32.xlu0 %v565, 21
        %v1447 = vpop.permute.xlu0 %1446
        %1448 = vrot.lane.b32.xlu0 %v566, 21
        %v1449 = vpop.permute.xlu0 %1448
        %1450 = vrot.lane.b32.xlu0 %v567, 21
        %v1451 = vpop.permute.xlu0 %1450
        %1452 = vrot.lane.b32.xlu0 %v568, 21
        %v1453 = vpop.permute.xlu0 %1452
        %1454 = vrot.lane.b32.xlu0 %v569, 21
        %v1455 = vpop.permute.xlu0 %1454
        %1456 = vrot.lane.b32.xlu0 %v570, 21
        %v1457 = vpop.permute.xlu0 %1456
        %1458 = vrot.lane.b32.xlu0 %v571, 21
        %v1459 = vpop.permute.xlu0 %1458
        %1460 = vrot.lane.b32.xlu0 %v572, 21
        %v1461 = vpop.permute.xlu0 %1460
        %1462 = vrot.lane.b32.xlu0 %v573, 21
        %v1463 = vpop.permute.xlu0 %1462
        %1464 = vrot.lane.b32.xlu0 %v574, 21
        %v1465 = vpop.permute.xlu0 %1464
        %1466 = vrot.lane.b32.xlu0 %v575, 21
        %v1467 = vpop.permute.xlu0 %1466
        %1468 = vrot.lane.b32.xlu0 %v576, 21
        %v1469 = vpop.permute.xlu0 %1468
        %1470 = vrot.lane.b32.xlu0 %v577, 21
        %v1471 = vpop.permute.xlu0 %1470
        %1472 = vrot.lane.b32.xlu0 %v578, 21
        %v1473 = vpop.permute.xlu0 %1472
        %1474 = vrot.lane.b32.xlu0 %v579, 21
        %v1475 = vpop.permute.xlu0 %1474
        %1540 = vrot.lane.b32.xlu0 %v580, 24
        %v1541 = vpop.permute.xlu0 %1540
        %1542 = vrot.lane.b32.xlu0 %v581, 24
        %v1543 = vpop.permute.xlu0 %1542
        %1544 = vrot.lane.b32.xlu0 %v582, 24
        %v1545 = vpop.permute.xlu0 %1544
        %1546 = vrot.lane.b32.xlu0 %v583, 24
        %v1547 = vpop.permute.xlu0 %1546
        %1548 = vrot.lane.b32.xlu0 %v584, 24
        %v1549 = vpop.permute.xlu0 %1548
        %1550 = vrot.lane.b32.xlu0 %v585, 24
        %v1551 = vpop.permute.xlu0 %1550
        %1552 = vrot.lane.b32.xlu0 %v586, 24
        %v1553 = vpop.permute.xlu0 %1552
        %1554 = vrot.lane.b32.xlu0 %v587, 24
        %v1555 = vpop.permute.xlu0 %1554
        %1556 = vrot.lane.b32.xlu0 %v588, 24
        %v1557 = vpop.permute.xlu0 %1556
        %1558 = vrot.lane.b32.xlu0 %v589, 24
        %v1559 = vpop.permute.xlu0 %1558
        %1560 = vrot.lane.b32.xlu0 %v590, 24
        %v1561 = vpop.permute.xlu0 %1560
        %1562 = vrot.lane.b32.xlu0 %v591, 24
        %v1563 = vpop.permute.xlu0 %1562
        %1564 = vrot.lane.b32.xlu0 %v592, 24
        %v1565 = vpop.permute.xlu0 %1564
        %1566 = vrot.lane.b32.xlu0 %v593, 24
        %v1567 = vpop.permute.xlu0 %1566
        %1568 = vrot.lane.b32.xlu0 %v594, 24
        %v1569 = vpop.permute.xlu0 %1568
        %1570 = vrot.lane.b32.xlu0 %v595, 24
        %v1571 = vpop.permute.xlu0 %1570
        %1572 = vrot.lane.b32.xlu0 %v596, 24
        %v1573 = vpop.permute.xlu0 %1572
        %1574 = vrot.lane.b32.xlu0 %v597, 24
        %v1575 = vpop.permute.xlu0 %1574
        %1576 = vrot.lane.b32.xlu0 %v598, 24
        %v1577 = vpop.permute.xlu0 %1576
        %1578 = vrot.lane.b32.xlu0 %v599, 24
        %v1579 = vpop.permute.xlu0 %1578
        %1580 = vrot.lane.b32.xlu0 %v600, 24
        %v1581 = vpop.permute.xlu0 %1580
        %1582 = vrot.lane.b32.xlu0 %v601, 24
        %v1583 = vpop.permute.xlu0 %1582
        %1584 = vrot.lane.b32.xlu0 %v602, 24
        %v1585 = vpop.permute.xlu0 %1584
        %1586 = vrot.lane.b32.xlu0 %v603, 24
        %v1587 = vpop.permute.xlu0 %1586
        %1588 = vrot.lane.b32.xlu0 %v604, 24
        %v1589 = vpop.permute.xlu0 %1588
        %1590 = vrot.lane.b32.xlu0 %v605, 24
        %v1591 = vpop.permute.xlu0 %1590
        %1592 = vrot.lane.b32.xlu0 %v606, 24
        %v1593 = vpop.permute.xlu0 %1592
        %1594 = vrot.lane.b32.xlu0 %v607, 24
        %v1595 = vpop.permute.xlu0 %1594
        %1596 = vrot.lane.b32.xlu0 %v608, 24
        %v1597 = vpop.permute.xlu0 %1596
        %1598 = vrot.lane.b32.xlu0 %v609, 24
        %v1599 = vpop.permute.xlu0 %1598
        %1600 = vrot.lane.b32.xlu0 %v610, 24
        %v1601 = vpop.permute.xlu0 %1600
        %1602 = vrot.lane.b32.xlu0 %v611, 24
        %v1603 = vpop.permute.xlu0 %1602
        %v1636 = vsel %vm170, %v323, %v645
        %v1637 = vsel %vm170, %v324, %v647
        %v1638 = vsel %vm170, %v325, %v649
        %v1639 = vsel %vm170, %v326, %v651
        %v1640 = vsel %vm170, %v327, %v653
        %v1641 = vsel %vm170, %v328, %v655
        %v1642 = vsel %vm170, %v329, %v657
        %v1643 = vsel %vm170, %v330, %v659
        %v1644 = vsel %vm170, %v331, %v661
        %v1645 = vsel %vm170, %v332, %v663
        %v1646 = vsel %vm170, %v333, %v665
        %v1647 = vsel %vm170, %v334, %v667
        %v1648 = vsel %vm170, %v335, %v669
        %v1649 = vsel %vm170, %v336, %v671
        %v1650 = vsel %vm170, %v337, %v673
        %v1651 = vsel %vm170, %v338, %v675
        %v1652 = vsel %vm170, %v339, %v677
        %v1653 = vsel %vm170, %v340, %v679
        %v1654 = vsel %vm170, %v341, %v681
        %v1655 = vsel %vm170, %v342, %v683
        %v1656 = vsel %vm170, %v343, %v685
        %v1657 = vsel %vm170, %v344, %v687
        %v1658 = vsel %vm170, %v345, %v689
        %v1659 = vsel %vm170, %v346, %v691
        %v1660 = vsel %vm170, %v347, %v693
        %v1661 = vsel %vm170, %v348, %v695
        %v1662 = vsel %vm170, %v349, %v697
        %v1663 = vsel %vm170, %v350, %v699
        %v1664 = vsel %vm170, %v351, %v701
        %v1665 = vsel %vm170, %v352, %v703
        %v1666 = vsel %vm170, %v353, %v705
        %v1667 = vsel %vm170, %v354, %v707
        %vm1668 = vcmask 48128
        %v1669 = vsel %vm1668, %v1636, %v773
        %v1670 = vsel %vm1668, %v1637, %v775
        %v1671 = vsel %vm1668, %v1638, %v777
        %v1672 = vsel %vm1668, %v1639, %v779
        %v1673 = vsel %vm1668, %v1640, %v781
        %v1674 = vsel %vm1668, %v1641, %v783
        %v1675 = vsel %vm1668, %v1642, %v785
        %v1676 = vsel %vm1668, %v1643, %v787
        %v1677 = vsel %vm1668, %v1644, %v789
        %v1678 = vsel %vm1668, %v1645, %v791
        %v1679 = vsel %vm1668, %v1646, %v793
        %v1680 = vsel %vm1668, %v1647, %v795
        %v1681 = vsel %vm1668, %v1648, %v797
        %v1682 = vsel %vm1668, %v1649, %v799
        %v1683 = vsel %vm1668, %v1650, %v801
        %v1684 = vsel %vm1668, %v1651, %v803
        %v1685 = vsel %vm1668, %v1652, %v805
        %v1686 = vsel %vm1668, %v1653, %v807
        %v1687 = vsel %vm1668, %v1654, %v809
        %v1688 = vsel %vm1668, %v1655, %v811
        %v1689 = vsel %vm1668, %v1656, %v813
        %v1690 = vsel %vm1668, %v1657, %v815
        %v1691 = vsel %vm1668, %v1658, %v817
        %v1692 = vsel %vm1668, %v1659, %v819
        %v1693 = vsel %vm1668, %v1660, %v821
        %v1694 = vsel %vm1668, %v1661, %v823
        %v1695 = vsel %vm1668, %v1662, %v825
        %v1696 = vsel %vm1668, %v1663, %v827
        %v1697 = vsel %vm1668, %v1664, %v829
        %v1698 = vsel %vm1668, %v1665, %v831
        %v1699 = vsel %vm1668, %v1666, %v833
        %v1700 = vsel %vm1668, %v1667, %v835
        %vm1701 = vcmask 72704
        %v1702 = vsel %vm1701, %v1669, %v901
        %v1703 = vsel %vm1701, %v1670, %v903
        %v1704 = vsel %vm1701, %v1671, %v905
        %v1705 = vsel %vm1701, %v1672, %v907
        %v1706 = vsel %vm1701, %v1673, %v909
        %v1707 = vsel %vm1701, %v1674, %v911
        %v1708 = vsel %vm1701, %v1675, %v913
        %v1709 = vsel %vm1701, %v1676, %v915
        %v1710 = vsel %vm1701, %v1677, %v917
        %v1711 = vsel %vm1701, %v1678, %v919
        %v1712 = vsel %vm1701, %v1679, %v921
        %v1713 = vsel %vm1701, %v1680, %v923
        %v1714 = vsel %vm1701, %v1681, %v925
        %v1715 = vsel %vm1701, %v1682, %v927
        %v1716 = vsel %vm1701, %v1683, %v929
        %v1717 = vsel %vm1701, %v1684, %v931
        %v1718 = vsel %vm1701, %v1685, %v933
        %v1719 = vsel %vm1701, %v1686, %v935
        %v1720 = vsel %vm1701, %v1687, %v937
        %v1721 = vsel %vm1701, %v1688, %v939
        %v1722 = vsel %vm1701, %v1689, %v941
        %v1723 = vsel %vm1701, %v1690, %v943
        %v1724 = vsel %vm1701, %v1691, %v945
        %v1725 = vsel %vm1701, %v1692, %v947
        %v1726 = vsel %vm1701, %v1693, %v949
        %v1727 = vsel %vm1701, %v1694, %v951
        %v1728 = vsel %vm1701, %v1695, %v953
        %v1729 = vsel %vm1701, %v1696, %v955
        %v1730 = vsel %vm1701, %v1697, %v957
        %v1731 = vsel %vm1701, %v1698, %v959
        %v1732 = vsel %vm1701, %v1699, %v961
        %v1733 = vsel %vm1701, %v1700, %v963
        %vm1734 = vcmask 97280
        %v1735 = vsel %vm1734, %v1702, %v1029
        %v1736 = vsel %vm1734, %v1703, %v1031
        %v1737 = vsel %vm1734, %v1704, %v1033
        %v1738 = vsel %vm1734, %v1705, %v1035
        %v1739 = vsel %vm1734, %v1706, %v1037
        %v1740 = vsel %vm1734, %v1707, %v1039
        %v1741 = vsel %vm1734, %v1708, %v1041
        %v1742 = vsel %vm1734, %v1709, %v1043
        %v1743 = vsel %vm1734, %v1710, %v1045
        %v1744 = vsel %vm1734, %v1711, %v1047
        %v1745 = vsel %vm1734, %v1712, %v1049
        %v1746 = vsel %vm1734, %v1713, %v1051
        %v1747 = vsel %vm1734, %v1714, %v1053
        %v1748 = vsel %vm1734, %v1715, %v1055
        %v1749 = vsel %vm1734, %v1716, %v1057
        %v1750 = vsel %vm1734, %v1717, %v1059
        %v1751 = vsel %vm1734, %v1718, %v1061
        %v1752 = vsel %vm1734, %v1719, %v1063
        %v1753 = vsel %vm1734, %v1720, %v1065
        %v1754 = vsel %vm1734, %v1721, %v1067
        %v1755 = vsel %vm1734, %v1722, %v1069
        %v1756 = vsel %vm1734, %v1723, %v1071
        %v1757 = vsel %vm1734, %v1724, %v1073
        %v1758 = vsel %vm1734, %v1725, %v1075
        %v1759 = vsel %vm1734, %v1726, %v1077
        %v1760 = vsel %vm1734, %v1727, %v1079
        %v1761 = vsel %vm1734, %v1728, %v1081
        %v1762 = vsel %vm1734, %v1729, %v1083
        %v1763 = vsel %vm1734, %v1730, %v1085
        %v1764 = vsel %vm1734, %v1731, %v1087
        %v1765 = vsel %vm1734, %v1732, %v1089
        %v1766 = vsel %vm1734, %v1733, %v1091
        %vm1767 = vcmask 121856
        %v1768 = vsel %vm1767, %v1735, %v1157
        %v1769 = vsel %vm1767, %v1736, %v1159
        %v1770 = vsel %vm1767, %v1737, %v1161
        %v1771 = vsel %vm1767, %v1738, %v1163
        %v1772 = vsel %vm1767, %v1739, %v1165
        %v1773 = vsel %vm1767, %v1740, %v1167
        %v1774 = vsel %vm1767, %v1741, %v1169
        %v1775 = vsel %vm1767, %v1742, %v1171
        %v1776 = vsel %vm1767, %v1743, %v1173
        %v1777 = vsel %vm1767, %v1744, %v1175
        %v1778 = vsel %vm1767, %v1745, %v1177
        %v1779 = vsel %vm1767, %v1746, %v1179
        %v1780 = vsel %vm1767, %v1747, %v1181
        %v1781 = vsel %vm1767, %v1748, %v1183
        %v1782 = vsel %vm1767, %v1749, %v1185
        %v1783 = vsel %vm1767, %v1750, %v1187
        %v1784 = vsel %vm1767, %v1751, %v1189
        %v1785 = vsel %vm1767, %v1752, %v1191
        %v1786 = vsel %vm1767, %v1753, %v1193
        %v1787 = vsel %vm1767, %v1754, %v1195
        %v1788 = vsel %vm1767, %v1755, %v1197
        %v1789 = vsel %vm1767, %v1756, %v1199
        %v1790 = vsel %vm1767, %v1757, %v1201
        %v1791 = vsel %vm1767, %v1758, %v1203
        %v1792 = vsel %vm1767, %v1759, %v1205
        %v1793 = vsel %vm1767, %v1760, %v1207
        %v1794 = vsel %vm1767, %v1761, %v1209
        %v1795 = vsel %vm1767, %v1762, %v1211
        %v1796 = vsel %vm1767, %v1763, %v1213
        %v1797 = vsel %vm1767, %v1764, %v1215
        %v1798 = vsel %vm1767, %v1765, %v1217
        %v1799 = vsel %vm1767, %v1766, %v1219
        %vm1800 = vcmask 146432
        %v1801 = vsel %vm1800, %v1768, %v1285
        %v1802 = vsel %vm1800, %v1769, %v1287
        %v1803 = vsel %vm1800, %v1770, %v1289
        %v1804 = vsel %vm1800, %v1771, %v1291
        %v1805 = vsel %vm1800, %v1772, %v1293
        %v1806 = vsel %vm1800, %v1773, %v1295
        %v1807 = vsel %vm1800, %v1774, %v1297
        %v1808 = vsel %vm1800, %v1775, %v1299
        %v1809 = vsel %vm1800, %v1776, %v1301
        %v1810 = vsel %vm1800, %v1777, %v1303
        %v1811 = vsel %vm1800, %v1778, %v1305
        %v1812 = vsel %vm1800, %v1779, %v1307
        %v1813 = vsel %vm1800, %v1780, %v1309
        %v1814 = vsel %vm1800, %v1781, %v1311
        %v1815 = vsel %vm1800, %v1782, %v1313
        %v1816 = vsel %vm1800, %v1783, %v1315
        %v1817 = vsel %vm1800, %v1784, %v1317
        %v1818 = vsel %vm1800, %v1785, %v1319
        %v1819 = vsel %vm1800, %v1786, %v1321
        %v1820 = vsel %vm1800, %v1787, %v1323
        %v1821 = vsel %vm1800, %v1788, %v1325
        %v1822 = vsel %vm1800, %v1789, %v1327
        %v1823 = vsel %vm1800, %v1790, %v1329
        %v1824 = vsel %vm1800, %v1791, %v1331
        %v1825 = vsel %vm1800, %v1792, %v1333
        %v1826 = vsel %vm1800, %v1793, %v1335
        %v1827 = vsel %vm1800, %v1794, %v1337
        %v1828 = vsel %vm1800, %v1795, %v1339
        %v1829 = vsel %vm1800, %v1796, %v1341
        %v1830 = vsel %vm1800, %v1797, %v1343
        %v1831 = vsel %vm1800, %v1798, %v1345
        %v1832 = vsel %vm1800, %v1799, %v1347
        %vm1833 = vcmask 171008
        %v1834 = vsel %vm1833, %v1801, %v1413
        %v1835 = vsel %vm1833, %v1802, %v1415
        %v1836 = vsel %vm1833, %v1803, %v1417
        %v1837 = vsel %vm1833, %v1804, %v1419
        %v1838 = vsel %vm1833, %v1805, %v1421
        %v1839 = vsel %vm1833, %v1806, %v1423
        %v1840 = vsel %vm1833, %v1807, %v1425
        %v1841 = vsel %vm1833, %v1808, %v1427
        %v1842 = vsel %vm1833, %v1809, %v1429
        %v1843 = vsel %vm1833, %v1810, %v1431
        %v1844 = vsel %vm1833, %v1811, %v1433
        %v1845 = vsel %vm1833, %v1812, %v1435
        %v1846 = vsel %vm1833, %v1813, %v1437
        %v1847 = vsel %vm1833, %v1814, %v1439
        %v1848 = vsel %vm1833, %v1815, %v1441
        %v1849 = vsel %vm1833, %v1816, %v1443
        %v1850 = vsel %vm1833, %v1817, %v1445
        %v1851 = vsel %vm1833, %v1818, %v1447
        %v1852 = vsel %vm1833, %v1819, %v1449
        %v1853 = vsel %vm1833, %v1820, %v1451
        %v1854 = vsel %vm1833, %v1821, %v1453
        %v1855 = vsel %vm1833, %v1822, %v1455
        %v1856 = vsel %vm1833, %v1823, %v1457
        %v1857 = vsel %vm1833, %v1824, %v1459
        %v1858 = vsel %vm1833, %v1825, %v1461
        %v1859 = vsel %vm1833, %v1826, %v1463
        %v1860 = vsel %vm1833, %v1827, %v1465
        %v1861 = vsel %vm1833, %v1828, %v1467
        %v1862 = vsel %vm1833, %v1829, %v1469
        %v1863 = vsel %vm1833, %v1830, %v1471
        %v1864 = vsel %vm1833, %v1831, %v1473
        %v1865 = vsel %vm1833, %v1832, %v1475
        %vm1866 = vcmask 195584
        %v1867 = vsel %vm1866, %v1834, %v1541
        %v1868 = vsel %vm1866, %v1835, %v1543
        %v1869 = vsel %vm1866, %v1836, %v1545
        %v1870 = vsel %vm1866, %v1837, %v1547
        %v1871 = vsel %vm1866, %v1838, %v1549
        %v1872 = vsel %vm1866, %v1839, %v1551
        %v1873 = vsel %vm1866, %v1840, %v1553
        %v1874 = vsel %vm1866, %v1841, %v1555
        %v1875 = vsel %vm1866, %v1842, %v1557
        %v1876 = vsel %vm1866, %v1843, %v1559
        %v1877 = vsel %vm1866, %v1844, %v1561
        %v1878 = vsel %vm1866, %v1845, %v1563
        %v1879 = vsel %vm1866, %v1846, %v1565
        %v1880 = vsel %vm1866, %v1847, %v1567
        %v1881 = vsel %vm1866, %v1848, %v1569
        %v1882 = vsel %vm1866, %v1849, %v1571
        %v1883 = vsel %vm1866, %v1850, %v1573
        %v1884 = vsel %vm1866, %v1851, %v1575
        %v1885 = vsel %vm1866, %v1852, %v1577
        %v1886 = vsel %vm1866, %v1853, %v1579
        %v1887 = vsel %vm1866, %v1854, %v1581
        %v1888 = vsel %vm1866, %v1855, %v1583
        %v1889 = vsel %vm1866, %v1856, %v1585
        %v1890 = vsel %vm1866, %v1857, %v1587
        %v1891 = vsel %vm1866, %v1858, %v1589
        %v1892 = vsel %vm1866, %v1859, %v1591
        %v1893 = vsel %vm1866, %v1860, %v1593
        %v1894 = vsel %vm1866, %v1861, %v1595
        %v1895 = vsel %vm1866, %v1862, %v1597
        %v1896 = vsel %vm1866, %v1863, %v1599
        %v1897 = vsel %vm1866, %v1864, %v1601
        %v1898 = vsel %vm1866, %v1865, %v1603
        %v1899 = vpack.c.bf16 %v1868, %v1867
        %v1900 = vpack.c.bf16 %v1870, %v1869
        %v1901 = vpack.c.bf16 %v1872, %v1871
        %v1902 = vpack.c.bf16 %v1874, %v1873
        %v1903 = vpack.c.bf16 %v1876, %v1875
        %v1904 = vpack.c.bf16 %v1878, %v1877
        %v1905 = vpack.c.bf16 %v1880, %v1879
        %v1906 = vpack.c.bf16 %v1882, %v1881
        %v1907 = vpack.c.bf16 %v1884, %v1883
        %v1908 = vpack.c.bf16 %v1886, %v1885
        %v1909 = vpack.c.bf16 %v1888, %v1887
        %v1910 = vpack.c.bf16 %v1890, %v1889
        %v1911 = vpack.c.bf16 %v1892, %v1891
        %v1912 = vpack.c.bf16 %v1894, %v1893
        %v1913 = vpack.c.bf16 %v1896, %v1895
        %v1914 = vpack.c.bf16 %v1898, %v1897
        %v1915 = vld [vmem:[%s1] sm:$0xf]
        %v1916 = vld [vmem:[%s1 + $0x4] sm:$0xf]
        %v1917 = vld [vmem:[%s1 + $0x8] sm:$0xf]
        %v1918 = vld [vmem:[%s1 + $0xc] sm:$0x3]
        %v1919 = vld [vmem:[%s2] sm:$0x1]
        %v1921 = vlaneseq
        %v1922 = vshrl.u32 %v1921, 7
        %v1923 = vsub.s32 0, %v1922
        %v1924 = vrot.slane %v1919, %v1923
        %v1930 = vunpack.c.l.b16 %v1915
        %v1931 = vunpack.c.l.b16 %v1916
        %v1932 = vunpack.c.l.b16 %v1917
        %v1933 = vunpack.c.l.b16 %v1918
        %v1934 = vpack.c.b16 %v1931, %v1930
        %v1935 = vpack.c.b16 %v1933, %v1932
        %vm1937 = vcmask 220160
        %v1939 = vsel %vm1937, %v1899, 0
        %v1942 = vsel %vm1937, %v1900, 0
        %v1945 = vsel %vm1937, %v1901, 0
        %v1948 = vsel %vm1937, %v1902, 0
        %v1951 = vsel %vm1937, %v1903, 0
        %v1954 = vsel %vm1937, %v1904, 0
        %v1957 = vsel %vm1937, %v1905, 0
        %v1960 = vsel %vm1937, %v1906, 0
        %v1963 = vsel %vm1937, %v1907, 0
        %v1966 = vsel %vm1937, %v1908, 0
        %v1969 = vsel %vm1937, %v1909, 0
        %v1972 = vsel %vm1937, %v1910, 0
        %v1975 = vsel %vm1937, %v1911, 0
        %v1978 = vsel %vm1937, %v1912, 0
        %v1981 = vsel %vm1937, %v1913, 0
        %v1984 = vsel %vm1937, %v1914, 0
        %vm1986 = vcmask 1044480
        %vm1987 = vcmask 1045504
        %v1988 = vsel %vm1986, 4294967295, 65535
        %v1989 = vsel %vm1987, %v1988, 0
        %v1991 = vand.u32 %v1935, %v1989
        %1993 = vmatprep.subr.bf16.mxu0 0
        %1994 = vmatpush1.bf16.msra.mxu0 %v1934
        %1995 = vmatprep.subr.bf16.mxu0 0
        %1996 = vmatpush1.bf16.msra.mxu0 %v1991
        %1997 = vmatprep.subr.bf16.mxu0 0
        %1998 = vmatpush1.bf16.msra.mxu0 0
        %1999 = vmatprep.subr.bf16.mxu0 0
        %2000 = vmatpush1.bf16.msra.mxu0 0
        %2001 = vmatprep.subr.bf16.mxu0 0
        %2002 = vmatpush1.bf16.msra.mxu0 0
        %2003 = vmatprep.subr.bf16.mxu0 0
        %2004 = vmatpush1.bf16.msra.mxu0 0
        %2005 = vmatprep.subr.bf16.mxu0 0
        %2006 = vmatpush1.bf16.msra.mxu0 0
        %2007 = vmatprep.subr.bf16.mxu0 0
        %2008 = vmatpush1.bf16.msra.mxu0 0
        %2009 = vmatprep.subr.bf16.mxu0 0
        %2010 = vmatpush1.bf16.msra.mxu0 0
        %2011 = vmatprep.subr.bf16.mxu0 0
        %2012 = vmatpush1.bf16.msra.mxu0 0
        %2013 = vmatprep.subr.bf16.mxu0 0
        %2014 = vmatpush1.bf16.msra.mxu0 0
        %2015 = vmatprep.subr.bf16.mxu0 0
        %2016 = vmatpush1.bf16.msra.mxu0 0
        %2017 = vmatprep.subr.bf16.mxu0 0
        %2018 = vmatpush1.bf16.msra.mxu0 0
        %2019 = vmatprep.subr.bf16.mxu0 0
        %2020 = vmatpush1.bf16.msra.mxu0 0
        %2021 = vmatprep.subr.bf16.mxu0 0
        %2022 = vmatpush1.bf16.msra.mxu0 0
        %2023 = vmatprep.subr.bf16.mxu0 0
        %2024 = vmatpush1.bf16.msra.mxu0 0
        %2025 = vmatprep.mubr.bf16.mxu0 0
        %2026 = vmatmul.mubr.bf16.gmra.mrb[0].mxu0 %v1939
        %v2027 = vpop.f32.mrb[0].mxu0
        %v2028 = vadd.f32 %v1924, %v2027
        %v2029 = vpop.f32.mrb[0].mxu0
        %v2030 = vpop.f32.mrb[0].mxu0
        %v2031 = vadd.f32 %v1924, %v2030
        %v2032 = vpop.f32.mrb[0].mxu0
        %2033 = vmatprep.mubr.bf16.mxu0 0
        %2034 = vmatmul.mubr.bf16.gmra.mrb[0].mxu0 %v1942
        %v2035 = vpop.f32.mrb[0].mxu0
        %v2036 = vadd.f32 %v1924, %v2035
        %v2037 = vpop.f32.mrb[0].mxu0
        %v2038 = vpop.f32.mrb[0].mxu0
        %v2039 = vadd.f32 %v1924, %v2038
        %v2040 = vpop.f32.mrb[0].mxu0
        %2041 = vmatprep.mubr.bf16.mxu0 0
        %2042 = vmatmul.mubr.bf16.gmra.mrb[0].mxu0 %v1945
        %v2043 = vpop.f32.mrb[0].mxu0
        %v2044 = vadd.f32 %v1924, %v2043
        %v2045 = vpop.f32.mrb[0].mxu0
        %v2046 = vpop.f32.mrb[0].mxu0
        %v2047 = vadd.f32 %v1924, %v2046
        %v2048 = vpop.f32.mrb[0].mxu0
        %2049 = vmatprep.mubr.bf16.mxu0 0
        %2050 = vmatmul.mubr.bf16.gmra.mrb[0].mxu0 %v1948
        %v2051 = vpop.f32.mrb[0].mxu0
        %v2052 = vadd.f32 %v1924, %v2051
        %v2053 = vpop.f32.mrb[0].mxu0
        %v2054 = vpop.f32.mrb[0].mxu0
        %v2055 = vadd.f32 %v1924, %v2054
        %v2056 = vpop.f32.mrb[0].mxu0
        %2057 = vmatprep.mubr.bf16.mxu0 0
        %2058 = vmatmul.mubr.bf16.gmra.mrb[0].mxu0 %v1951
        %v2059 = vpop.f32.mrb[0].mxu0
        %v2060 = vadd.f32 %v1924, %v2059
        %v2061 = vpop.f32.mrb[0].mxu0
        %v2062 = vpop.f32.mrb[0].mxu0
        %v2063 = vadd.f32 %v1924, %v2062
        %v2064 = vpop.f32.mrb[0].mxu0
        %2065 = vmatprep.mubr.bf16.mxu0 0
        %2066 = vmatmul.mubr.bf16.gmra.mrb[0].mxu0 %v1954
        %v2067 = vpop.f32.mrb[0].mxu0
        %v2068 = vadd.f32 %v1924, %v2067
        %v2069 = vpop.f32.mrb[0].mxu0
        %v2070 = vpop.f32.mrb[0].mxu0
        %v2071 = vadd.f32 %v1924, %v2070
        %v2072 = vpop.f32.mrb[0].mxu0
        %2073 = vmatprep.mubr.bf16.mxu0 0
        %2074 = vmatmul.mubr.bf16.gmra.mrb[0].mxu0 %v1957
        %v2075 = vpop.f32.mrb[0].mxu0
        %v2076 = vadd.f32 %v1924, %v2075
        %v2077 = vpop.f32.mrb[0].mxu0
        %v2078 = vpop.f32.mrb[0].mxu0
        %v2079 = vadd.f32 %v1924, %v2078
        %v2080 = vpop.f32.mrb[0].mxu0
        %2081 = vmatprep.mubr.bf16.mxu0 0
        %2082 = vmatmul.mubr.bf16.gmra.mrb[0].mxu0 %v1960
        %v2083 = vpop.f32.mrb[0].mxu0
        %v2084 = vadd.f32 %v1924, %v2083
        %v2085 = vpop.f32.mrb[0].mxu0
        %v2086 = vpop.f32.mrb[0].mxu0
        %v2087 = vadd.f32 %v1924, %v2086
        %v2088 = vpop.f32.mrb[0].mxu0
        %2089 = vmatprep.mubr.bf16.mxu0 0
        %2090 = vmatmul.mubr.bf16.gmra.mrb[0].mxu0 %v1963
        %v2091 = vpop.f32.mrb[0].mxu0
        %v2092 = vadd.f32 %v1924, %v2091
        %v2093 = vpop.f32.mrb[0].mxu0
        %v2094 = vpop.f32.mrb[0].mxu0
        %v2095 = vadd.f32 %v1924, %v2094
        %v2096 = vpop.f32.mrb[0].mxu0
        %2097 = vmatprep.mubr.bf16.mxu0 0
        %2098 = vmatmul.mubr.bf16.gmra.mrb[0].mxu0 %v1966
        %v2099 = vpop.f32.mrb[0].mxu0
        %v2100 = vadd.f32 %v1924, %v2099
        %v2101 = vpop.f32.mrb[0].mxu0
        %v2102 = vpop.f32.mrb[0].mxu0
        %v2103 = vadd.f32 %v1924, %v2102
        %v2104 = vpop.f32.mrb[0].mxu0
        %2105 = vmatprep.mubr.bf16.mxu0 0
        %2106 = vmatmul.mubr.bf16.gmra.mrb[0].mxu0 %v1969
        %v2107 = vpop.f32.mrb[0].mxu0
        %v2108 = vadd.f32 %v1924, %v2107
        %v2109 = vpop.f32.mrb[0].mxu0
        %v2110 = vpop.f32.mrb[0].mxu0
        %v2111 = vadd.f32 %v1924, %v2110
        %v2112 = vpop.f32.mrb[0].mxu0
        %2113 = vmatprep.mubr.bf16.mxu0 0
        %2114 = vmatmul.mubr.bf16.gmra.mrb[0].mxu0 %v1972
        %v2115 = vpop.f32.mrb[0].mxu0
        %v2116 = vadd.f32 %v1924, %v2115
        %v2117 = vpop.f32.mrb[0].mxu0
        %v2118 = vpop.f32.mrb[0].mxu0
        %v2119 = vadd.f32 %v1924, %v2118
        %v2120 = vpop.f32.mrb[0].mxu0
        %2121 = vmatprep.mubr.bf16.mxu0 0
        %2122 = vmatmul.mubr.bf16.gmra.mrb[0].mxu0 %v1975
        %v2123 = vpop.f32.mrb[0].mxu0
        %v2124 = vadd.f32 %v1924, %v2123
        %v2125 = vpop.f32.mrb[0].mxu0
        %v2126 = vpop.f32.mrb[0].mxu0
        %v2127 = vadd.f32 %v1924, %v2126
        %v2128 = vpop.f32.mrb[0].mxu0
        %2129 = vmatprep.mubr.bf16.mxu0 0
        %2130 = vmatmul.mubr.bf16.gmra.mrb[0].mxu0 %v1978
        %v2131 = vpop.f32.mrb[0].mxu0
        %v2132 = vadd.f32 %v1924, %v2131
        %v2133 = vpop.f32.mrb[0].mxu0
        %v2134 = vpop.f32.mrb[0].mxu0
        %v2135 = vadd.f32 %v1924, %v2134
        %v2136 = vpop.f32.mrb[0].mxu0
        %2137 = vmatprep.mubr.bf16.mxu0 0
        %2138 = vmatmul.mubr.bf16.gmra.mrb[0].mxu0 %v1981
        %v2139 = vpop.f32.mrb[0].mxu0
        %v2140 = vadd.f32 %v1924, %v2139
        %v2141 = vpop.f32.mrb[0].mxu0
        %v2142 = vpop.f32.mrb[0].mxu0
        %v2143 = vadd.f32 %v1924, %v2142
        %v2144 = vpop.f32.mrb[0].mxu0
        %2145 = vmatprep.mubr.bf16.mxu0 0
        %2146 = vmatmul.mubr.bf16.gmra.mrb[0].mxu0 %v1984
        %v2147 = vpop.f32.mrb[0].mxu0
        %v2148 = vadd.f32 %v1924, %v2147
        %v2149 = vpop.f32.mrb[0].mxu0
        %v2150 = vpop.f32.mrb[0].mxu0
        %v2151 = vadd.f32 %v1924, %v2150
        %v2152 = vpop.f32.mrb[0].mxu0
        %2153 = vdwg.mxu0
        %v2154 = vmax.f32 %v2028, 0.0
        %v2155 = vmax.f32 %v2031, 0.0
        %v2156 = vmax.f32 %v2036, 0.0
        %v2157 = vmax.f32 %v2039, 0.0
        %v2158 = vmax.f32 %v2044, 0.0
        %v2159 = vmax.f32 %v2047, 0.0
        %v2160 = vmax.f32 %v2052, 0.0
        %v2161 = vmax.f32 %v2055, 0.0
        %v2162 = vmax.f32 %v2060, 0.0
        %v2163 = vmax.f32 %v2063, 0.0
        %v2164 = vmax.f32 %v2068, 0.0
        %v2165 = vmax.f32 %v2071, 0.0
        %v2166 = vmax.f32 %v2076, 0.0
        %v2167 = vmax.f32 %v2079, 0.0
        %v2168 = vmax.f32 %v2084, 0.0
        %v2169 = vmax.f32 %v2087, 0.0
        %v2170 = vmax.f32 %v2092, 0.0
        %v2171 = vmax.f32 %v2095, 0.0
        %v2172 = vmax.f32 %v2100, 0.0
        %v2173 = vmax.f32 %v2103, 0.0
        %v2174 = vmax.f32 %v2108, 0.0
        %v2175 = vmax.f32 %v2111, 0.0
        %v2176 = vmax.f32 %v2116, 0.0
        %v2177 = vmax.f32 %v2119, 0.0
        %v2178 = vmax.f32 %v2124, 0.0
        %v2179 = vmax.f32 %v2127, 0.0
        %v2180 = vmax.f32 %v2132, 0.0
        %v2181 = vmax.f32 %v2135, 0.0
        %v2182 = vmax.f32 %v2140, 0.0
        %v2183 = vmax.f32 %v2143, 0.0
        %v2184 = vmax.f32 %v2148, 0.0
        %v2185 = vmax.f32 %v2151, 0.0
        %v2186 = vpack.c.bf16 %v2155, %v2154
        %v2187 = vpack.c.bf16 %v2157, %v2156
        %v2188 = vpack.c.bf16 %v2159, %v2158
        %v2189 = vpack.c.bf16 %v2161, %v2160
        %v2190 = vpack.c.bf16 %v2163, %v2162
        %v2191 = vpack.c.bf16 %v2165, %v2164
        %v2192 = vpack.c.bf16 %v2167, %v2166
        %v2193 = vpack.c.bf16 %v2169, %v2168
        %v2194 = vpack.c.bf16 %v2171, %v2170
        %v2195 = vpack.c.bf16 %v2173, %v2172
        %v2196 = vpack.c.bf16 %v2175, %v2174
        %v2197 = vpack.c.bf16 %v2177, %v2176
        %v2198 = vpack.c.bf16 %v2179, %v2178
        %v2199 = vpack.c.bf16 %v2181, %v2180
        %v2200 = vpack.c.bf16 %v2183, %v2182
        %v2201 = vpack.c.bf16 %v2185, %v2184
        %v2218 = vunpack.c.l.b16 %v2186
        %v2219 = vunpack.c.h.b16 %v2186
        %v2220 = vunpack.c.l.b16 %v2187
        %v2221 = vunpack.c.h.b16 %v2187
        %v2222 = vunpack.c.l.b16 %v2188
        %v2223 = vunpack.c.h.b16 %v2188
        %v2224 = vunpack.c.l.b16 %v2189
        %v2225 = vunpack.c.h.b16 %v2189
        %v2226 = vunpack.c.l.b16 %v2190
        %v2227 = vunpack.c.h.b16 %v2190
        %v2228 = vunpack.c.l.b16 %v2191
        %v2229 = vunpack.c.h.b16 %v2191
        %v2230 = vunpack.c.l.b16 %v2192
        %v2231 = vunpack.c.h.b16 %v2192
        %v2232 = vunpack.c.l.b16 %v2193
        %v2233 = vunpack.c.h.b16 %v2193
        %v2234 = vunpack.c.l.b16 %v2194
        %v2235 = vunpack.c.h.b16 %v2194
        %v2236 = vunpack.c.l.b16 %v2195
        %v2237 = vunpack.c.h.b16 %v2195
        %v2238 = vunpack.c.l.b16 %v2196
        %v2239 = vunpack.c.h.b16 %v2196
        %v2240 = vunpack.c.l.b16 %v2197
        %v2241 = vunpack.c.h.b16 %v2197
        %v2242 = vunpack.c.l.b16 %v2198
        %v2243 = vunpack.c.h.b16 %v2198
        %v2244 = vunpack.c.l.b16 %v2199
        %v2245 = vunpack.c.h.b16 %v2199
        %v2246 = vunpack.c.l.b16 %v2200
        %v2247 = vunpack.c.h.b16 %v2200
        %v2248 = vunpack.c.l.b16 %v2201
        %v2249 = vunpack.c.h.b16 %v2201
        %v2250 = vpack.c.b16 %v2218, %v2218
        %v2251 = vpack.c.b16 %v2219, %v2219
        %v2252 = vpack.c.b16 %v2220, %v2220
        %v2253 = vpack.c.b16 %v2221, %v2221
        %v2254 = vpack.c.b16 %v2222, %v2222
        %v2255 = vpack.c.b16 %v2223, %v2223
        %v2256 = vpack.c.b16 %v2224, %v2224
        %v2257 = vpack.c.b16 %v2225, %v2225
        %v2258 = vpack.c.b16 %v2226, %v2226
        %v2259 = vpack.c.b16 %v2227, %v2227
        %v2260 = vpack.c.b16 %v2228, %v2228
        %v2261 = vpack.c.b16 %v2229, %v2229
        %v2262 = vpack.c.b16 %v2230, %v2230
        %v2263 = vpack.c.b16 %v2231, %v2231
        %v2264 = vpack.c.b16 %v2232, %v2232
        %v2265 = vpack.c.b16 %v2233, %v2233
        %v2266 = vpack.c.b16 %v2234, %v2234
        %v2267 = vpack.c.b16 %v2235, %v2235
        %v2268 = vpack.c.b16 %v2236, %v2236
        %v2269 = vpack.c.b16 %v2237, %v2237
        %v2270 = vpack.c.b16 %v2238, %v2238
        %v2271 = vpack.c.b16 %v2239, %v2239
        %v2272 = vpack.c.b16 %v2240, %v2240
        %v2273 = vpack.c.b16 %v2241, %v2241
        %v2274 = vpack.c.b16 %v2242, %v2242
        %v2275 = vpack.c.b16 %v2243, %v2243
        %v2276 = vpack.c.b16 %v2244, %v2244
        %v2277 = vpack.c.b16 %v2245, %v2245
        %v2278 = vpack.c.b16 %v2246, %v2246
        %v2279 = vpack.c.b16 %v2247, %v2247
        %v2280 = vpack.c.b16 %v2248, %v2248
        %v2281 = vpack.c.b16 %v2249, %v2249
        %vm2314 = vcmask 519168
        %2315 = vst.msk [vmem:[%s163] sm:$0xf] %vm2314, %v2250
        %2316 = vst.msk [vmem:[%s163 + $0x4] sm:$0xf] %vm2314, %v2251
        %2317 = vst.msk [vmem:[%s163 + $0x8] sm:$0xf] %vm2314, %v2252
        %2318 = vst.msk [vmem:[%s163 + $0xc] sm:$0xf] %vm2314, %v2253
        %2319 = vst.msk [vmem:[%s163 + $0x10] sm:$0xf] %vm2314, %v2254
        %2320 = vst.msk [vmem:[%s163 + $0x14] sm:$0xf] %vm2314, %v2255
        %2321 = vst.msk [vmem:[%s163 + $0x18] sm:$0xf] %vm2314, %v2256
        %2322 = vst.msk [vmem:[%s163 + $0x1c] sm:$0xf] %vm2314, %v2257
        %2323 = vst.msk [vmem:[%s163 + $0x20] sm:$0xf] %vm2314, %v2258
        %2324 = vst.msk [vmem:[%s163 + $0x24] sm:$0xf] %vm2314, %v2259
        %2325 = vst.msk [vmem:[%s163 + $0x28] sm:$0xf] %vm2314, %v2260
        %2326 = vst.msk [vmem:[%s163 + $0x2c] sm:$0xf] %vm2314, %v2261
        %2327 = vst.msk [vmem:[%s163 + $0x30] sm:$0xf] %vm2314, %v2262
        %2328 = vst.msk [vmem:[%s163 + $0x34] sm:$0xf] %vm2314, %v2263
        %2329 = vst.msk [vmem:[%s163 + $0x38] sm:$0xf] %vm2314, %v2264
        %2330 = vst.msk [vmem:[%s163 + $0x3c] sm:$0xf] %vm2314, %v2265
        %2331 = vst.msk [vmem:[%s163 + $0x40] sm:$0xf] %vm2314, %v2266
        %2332 = vst.msk [vmem:[%s163 + $0x44] sm:$0xf] %vm2314, %v2267
        %2333 = vst.msk [vmem:[%s163 + $0x48] sm:$0xf] %vm2314, %v2268
        %2334 = vst.msk [vmem:[%s163 + $0x4c] sm:$0xf] %vm2314, %v2269
        %2335 = vst.msk [vmem:[%s163 + $0x50] sm:$0xf] %vm2314, %v2270
        %2336 = vst.msk [vmem:[%s163 + $0x54] sm:$0xf] %vm2314, %v2271
        %2337 = vst.msk [vmem:[%s163 + $0x58] sm:$0xf] %vm2314, %v2272
        %2338 = vst.msk [vmem:[%s163 + $0x5c] sm:$0xf] %vm2314, %v2273
        %2339 = vst.msk [vmem:[%s163 + $0x60] sm:$0xf] %vm2314, %v2274
        %2340 = vst.msk [vmem:[%s163 + $0x64] sm:$0xf] %vm2314, %v2275
        %2341 = vst.msk [vmem:[%s163 + $0x68] sm:$0xf] %vm2314, %v2276
        %2342 = vst.msk [vmem:[%s163 + $0x6c] sm:$0xf] %vm2314, %v2277
        %2343 = vst.msk [vmem:[%s163 + $0x70] sm:$0xf] %vm2314, %v2278
        %2344 = vst.msk [vmem:[%s163 + $0x74] sm:$0xf] %vm2314, %v2279
        %2345 = vst.msk [vmem:[%s163 + $0x78] sm:$0xf] %vm2314, %v2280
        %2346 = vst.msk [vmem:[%s163 + $0x7c] sm:$0xf] %vm2314, %v2281
        %s2347 = sand.u32 %s93, 1
        %s2348 = scalar_lea.sflag [#allocation4], %s2347
        %s2349 = sand.u32 %s93, 1
        %s2350 = smul.addr %s2349, 128
        %s2351 = scalar_lea.vmem [#allocation3], %s2350
        // Predicated region
        $region33: #{tpu_custom_call.1} parent=31 // pred_check
          %p2352 = pneg %p103
        $region34: #{tpu_custom_call.1} parent=31 // pred_check_branch
          %2354 = sbr.rel (%p2352) target = $region36
        $region35: #{tpu_custom_call.1} parent=31 // pred_region
          %s2356 = ssub.s32 2048, 2048
          %2357 = vsyncadd %s2348, %s2356
          %s2358 = smul.addr %s17, 32
          %s2359 = smul.addr %s2358, 64
          %s2360 = scalar_lea.hbm %s3, %s2359
          %s2361 = sshll.u32 %s2351, 4
          %s2362 = int_to_ptr.vmem [resolvable:$true] %s2361
          %2367 = dma.vmem_to_hbm [thread:$0]  %s2362, 2048, %s2360, %s2348, 64, 64, 4
        $region36: #{tpu_custom_call.1} parent=31 // pred_fallthru
          _
      $region32: #{tpu_custom_call.1} parent=5 // pred_fallthru
        _
      %p2368 = scmp.le.s32.totalorder 2, %s12
      // Predicated region
      $region37: #{tpu_custom_call.1} parent=5 // pred_check
        %p2369 = pneg %p2368
      $region38: #{tpu_custom_call.1} parent=5 // pred_check_branch
        %2371 = sbr.rel (%p2369) target = $region40
      $region39: #{tpu_custom_call.1} parent=5 // pred_region
        %s2372 = ssub.s32 %s12, 2
        // Predicated region
        $region41: #{tpu_custom_call.1} parent=39 // pred_check
          %p2373 = pneg %p109
        $region42: #{tpu_custom_call.1} parent=39 // pred_check_branch
          %2375 = sbr.rel (%p2373) target = $region44
        $region43: #{tpu_custom_call.1} parent=39 // pred_region
          %s2376 = sand.u32 %s94, 1
          %s2377 = scalar_lea.sflag [#allocation4], %s2376
          %s2378 = sand.u32 %s94, 1
          %s2379 = smul.addr %s2378, 128
          %s2380 = scalar_lea.vmem [#allocation3], %s2379
          %2381 = dma.done %s2377, 2048
        $region44: #{tpu_custom_call.1} parent=39 // pred_fallthru
          _
      $region40: #{tpu_custom_call.1} parent=5 // pred_fallthru
        _
    $region6: #{tpu_custom_call.1} parent=1 // loop_footer
      %s16 = sadd.s32 1, %s12
    $region7: #{tpu_custom_call.1} parent=1 // loop_footer_branch
      %11 = sbr.rel target = $region3
    $region8: #{tpu_custom_call.1} parent=1 // loop_exit
      _
    %2382 = vsyncpa [#allocation4], 1
    %s2383 = scalar_lea.sflag [#allocation4], 1
    %2384 = vsyncpa %s2383, 1

</llo_original>
